<compile_context>
chip_gen: v7x
topology: tpu7x:2x2x1
jax: 0.10.0
libtpu: 0.0.40
codegen_flags: <defaults>
</compile_context>

<pallas_src>
import functools

import jax
import jax.numpy as jnp
from jax.experimental import pallas as pl
from jax.experimental.pallas import tpu as pltpu

LN_EPS = 1e-5
_HIGHEST = jax.lax.Precision.HIGHEST


def _se_kernel(x_ref, w1_ref, b1_ref, g1_ref, be1_ref,
               w2_ref, b2_ref, g2_ref, be2_ref, out_ref, acc_ref,
               *, t_hw, inv_hw):
    """One (batch_block, spatial_tile) grid step.

    x_ref   : (t_n, C, t_hw) streamed spatial slab of t_n samples
    acc_ref : (t_n, C, acc_w) running lane-wide spatial sum (f32 VMEM scratch)
    out_ref : (t_n, 1, Cout) sigmoid gates (written on the last spatial step)
    """
    k = pl.program_id(1)

    # --- reset the lane-wide accumulator on the first spatial tile ----------
    @pl.when(k == 0)
    def _():
        acc_ref[...] = jnp.zeros_like(acc_ref)

    # --- spatial pooling: pure-VPU lane-wide partial sums (no MXU/XLU) ------
    if t_hw % 128 == 0:
        for j in range(t_hw // 128):
            acc_ref[...] += x_ref[:, :, j * 128:(j + 1) * 128].astype(jnp.float32)
    else:
        # Irregular small spatial extent: single full-HW block (k_steps == 1).
        acc_ref[...] += x_ref[...].astype(jnp.float32)

    # --- tiny channel-mixing epilogue: only on the last spatial tile --------
    @pl.when(k == pl.num_programs(1) - 1)
    def _():
        # Single cross-lane reduce of the lane-wide sums -> spatial mean.
        pooled = jnp.sum(acc_ref[...], axis=-1) * inv_hw          # (t_n, C)

        # Conv2d(C -> Cmid, 1x1): (t_n, C) @ (C, Cmid) + bias.
        h = jnp.dot(pooled, w1_ref[...],
                    preferred_element_type=jnp.float32, precision=_HIGHEST)
        h = h + b1_ref[...]

        # LayerNorm over channels (lane axis), affine fused into the scale.
        mu = jnp.mean(h, axis=-1, keepdims=True)
        var = jnp.mean((h - mu) * (h - mu), axis=-1, keepdims=True)
        scale = g1_ref[...] * jax.lax.rsqrt(var + LN_EPS)
        h = h * scale + (be1_ref[...] - mu * scale)

        h = jnp.maximum(h, 0.0)                                   # ReLU

        # Conv2d(Cmid -> Cout, 1x1): (t_n, Cmid) @ (Cmid, Cout) + bias.
        o = jnp.dot(h, w2_ref[...],
                    preferred_element_type=jnp.float32, precision=_HIGHEST)
        o = o + b2_ref[...]

        mu2 = jnp.mean(o, axis=-1, keepdims=True)
        var2 = jnp.mean((o - mu2) * (o - mu2), axis=-1, keepdims=True)
        scale2 = g2_ref[...] * jax.lax.rsqrt(var2 + LN_EPS)
        o = o * scale2 + (be2_ref[...] - mu2 * scale2)

        # Sigmoid; lane-dense (t_n, 1, Cout) store.
        out_ref[...] = jax.nn.sigmoid(o)[:, None, :]


def _largest_divisor_within(n, cap):
    cap = max(1, min(n, int(cap)))
    for d in range(cap, 0, -1):
        if n % d == 0:
            return d
    return 1


def _choose_tiles(N, C, HW, itemsize, max_block_bytes):
    """Pick (t_n, t_hw, hw_padded) with block bytes <= max_block_bytes."""
    lane_bytes = C * 128 * itemsize
    if HW % 128 == 0:
        hw_p = HW
    elif C * HW * itemsize <= max_block_bytes:
        # Irregular but small spatial extent: single full-HW block, no padding.
        t_n = _largest_divisor_within(N, max_block_bytes // (C * HW * itemsize))
        return t_n, HW, HW
    else:
        # Irregular and large: pad spatial axis up to a lane multiple.
        hw_p = ((HW + 127) // 128) * 128

    t_n = _largest_divisor_within(N, max(1, max_block_bytes // lane_bytes))
    per_group = t_n * lane_bytes
    n_groups = hw_p // 128
    best_g = 1
    for g in range(1, n_groups + 1):
        if n_groups % g == 0 and g * per_group <= max_block_bytes:
            best_g = g
    return t_n, best_g * 128, hw_p


def se_weight(x, params, *, t_n=None, t_hw=None,
              max_block_bytes=6 * 1024 * 1024):
    """x: (N, C, H, W) -> (N, Cout, 1, 1) float32."""
    N, C, H, W = x.shape
    HW = H * W
    w1, b1, g1, be1, w2, b2, g2, be2 = params
    c_mid = w1.shape[0]
    c_out = w2.shape[0]

    x_flat = x.reshape(N, C, HW)
    itemsize = x_flat.dtype.itemsize

    auto_t_n, auto_t_hw, hw_p = _choose_tiles(N, C, HW, itemsize, max_block_bytes)
    if t_n is None:
        t_n = auto_t_n
    if t_hw is None:
        t_hw = auto_t_hw

    assert N % t_n == 0, "batch block must divide N"
    assert hw_p % t_hw == 0, "spatial tile must divide (padded) H*W"
    assert t_hw == hw_p or t_hw % 128 == 0, "spatial tile must be lane-aligned"

    if hw_p != HW:
        # TODO(synk): padding costs one extra XLA pass over x in HBM; fold the
        # lane-alignment into the producer layout if this path is ever hot.
        x_flat = jnp.pad(x_flat, ((0, 0), (0, 0), (0, hw_p - HW)))

    n_blocks = N // t_n
    k_steps = hw_p // t_hw
    acc_w = 128 if t_hw % 128 == 0 else t_hw

    # Row-oriented parameters (channels on lanes): conv weights pre-transposed
    # once in the wrapper, bias / LN params as (1, C*) row vectors.
    w1_t = w1.T.astype(jnp.float32)                      # (C, Cmid)
    w2_t = w2.T.astype(jnp.float32)                      # (Cmid, Cout)
    b1r, g1r, be1r = (v.reshape(1, c_mid).astype(jnp.float32)
                      for v in (b1, g1, be1))
    b2r, g2r, be2r = (v.reshape(1, c_out).astype(jnp.float32)
                      for v in (b2, g2, be2))

    def const(shape):
        # Resident parameter: constant index map -> DMA'd once, stays in VMEM.
        return pl.BlockSpec(shape, lambda n, k: tuple(0 for _ in shape))

    # Scoped-VMEM budget: double-buffered x blocks + accumulator + resident
    # params/output, with headroom.  Stays well under the 32 MiB scoped
    # default (and v7x's 64 MiB physical VMEM) at the 6 MiB block cap.
    block_bytes = t_n * C * t_hw * itemsize
    acc_bytes = t_n * C * acc_w * 4
    param_bytes = 4 * (C * c_mid + c_mid * c_out + 3 * (c_mid + c_out))
    out_bytes = t_n * c_out * 4
    vmem_limit = int(2 * block_bytes + acc_bytes
                     + 2 * (param_bytes + out_bytes) + (4 << 20))
    vmem_limit = max(16 << 20, vmem_limit)

    kernel = functools.partial(_se_kernel, t_hw=t_hw, inv_hw=1.0 / float(HW))

    out = pl.pallas_call(
        kernel,
        out_shape=jax.ShapeDtypeStruct((N, 1, c_out), jnp.float32),
        grid=(n_blocks, k_steps),
        in_specs=[
            # streamed x slab: t_n samples, all channels, one spatial tile
            pl.BlockSpec((t_n, C, t_hw), lambda n, k: (n, 0, k)),
            const((C, c_mid)),                                   # w1^T
            const((1, c_mid)), const((1, c_mid)), const((1, c_mid)),  # b1,g1,be1
            const((c_mid, c_out)),                               # w2^T
            const((1, c_out)), const((1, c_out)), const((1, c_out)),  # b2,g2,be2
        ],
        # Output block is constant along the spatial (reduction) axis.
        out_specs=pl.BlockSpec((t_n, 1, c_out), lambda n, k: (n, 0, 0)),
        scratch_shapes=[pltpu.VMEM((t_n, C, acc_w), jnp.float32)],
        compiler_params=pltpu.CompilerParams(
            dimension_semantics=("parallel", "arbitrary"),
            vmem_limit_bytes=vmem_limit,
        ),
    )(x_flat, w1_t, b1r, g1r, be1r, w2_t, b2r, g2r, be2r)

    return out.reshape(N, c_out, 1, 1)


def init_params(key, in_size, out_size, reduction=4):
    c_mid = in_size // reduction
    k1, k2, k3, k4 = jax.random.split(key, 4)
    # Conv2d 1x1 weights stored as (out, in); deterministic small init.
    w1 = jax.random.normal(k1, (c_mid, in_size), jnp.float32) * 0.1
    b1 = jax.random.normal(k2, (c_mid,), jnp.float32) * 0.1
    w2 = jax.random.normal(k3, (out_size, c_mid), jnp.float32) * 0.1
    b2 = jax.random.normal(k4, (out_size,), jnp.float32) * 0.1
    # LayerNorm affine params: PyTorch default init (ones / zeros).
    g1 = jnp.ones((c_mid,), jnp.float32)
    be1 = jnp.zeros((c_mid,), jnp.float32)
    g2 = jnp.ones((out_size,), jnp.float32)
    be2 = jnp.zeros((out_size,), jnp.float32)
    return (w1, b1, g1, be1, w2, b2, g2, be2)


def _reference(x, params):
    # Pure-JAX reference (full-precision contractions) for a sanity check.
    w1, b1, g1, be1, w2, b2, g2, be2 = params
    pooled = jnp.mean(x, axis=(2, 3))                            # (N, C)
    h = jnp.dot(pooled, w1.T, precision=_HIGHEST) + b1
    mu = jnp.mean(h, -1, keepdims=True)
    var = jnp.mean((h - mu) ** 2, -1, keepdims=True)
    h = (h - mu) / jnp.sqrt(var + LN_EPS) * g1 + be1
    h = jnp.maximum(h, 0.0)
    o = jnp.dot(h, w2.T, precision=_HIGHEST) + b2
    mu2 = jnp.mean(o, -1, keepdims=True)
    var2 = jnp.mean((o - mu2) ** 2, -1, keepdims=True)
    o = (o - mu2) / jnp.sqrt(var2 + LN_EPS) * g2 + be2
    return jax.nn.sigmoid(o)[:, :, None, None]


if __name__ == "__main__":
    key = jax.random.PRNGKey(0)
    kx, kp = jax.random.split(key)

    N, in_size, out_size, H, W = 2, 16, 8, 16, 16
    x = jax.random.normal(kx, (N, in_size, H, W), jnp.float32)
    params = init_params(kp, in_size, out_size, reduction=4)

    y_ref = _reference(x, params)

    # Auto-picked tiles (whole batch blocked, single spatial step here).
    y = jax.block_until_ready(se_weight(x, params))
    assert y.shape == (N, out_size, 1, 1)
    assert jnp.allclose(y, y_ref, atol=1e-5, rtol=1e-5)

    # Force multiple spatial steps to exercise streamed VPU accumulation.
    y2 = jax.block_until_ready(se_weight(x, params, t_hw=128))
    assert y2.shape == (N, out_size, 1, 1)
    assert jnp.allclose(y2, y_ref, atol=1e-5, rtol=1e-5)

    # Force multiple batch blocks to exercise the parallel grid axis.
    y3 = jax.block_until_ready(se_weight(x, params, t_n=1, t_hw=128))
    assert y3.shape == (N, out_size, 1, 1)
    assert jnp.allclose(y3, y_ref, atol=1e-5, rtol=1e-5)

    print("KERNEL_OK")
</pallas_src>

<mosaic_0001>
module attributes {stable_mosaic.version = 11 : i64} {
  func.func @_se_kernel(%arg0: i32, %arg1: i32, %arg2: memref<2x16x256xf32, #tpu.memory_space<vmem>>, %arg3: memref<16x4xf32, #tpu.memory_space<vmem>>, %arg4: memref<1x4xf32, #tpu.memory_space<vmem>>, %arg5: memref<1x4xf32, #tpu.memory_space<vmem>>, %arg6: memref<1x4xf32, #tpu.memory_space<vmem>>, %arg7: memref<4x8xf32, #tpu.memory_space<vmem>>, %arg8: memref<1x8xf32, #tpu.memory_space<vmem>>, %arg9: memref<1x8xf32, #tpu.memory_space<vmem>>, %arg10: memref<1x8xf32, #tpu.memory_space<vmem>>, %arg11: memref<2x1x8xf32, #tpu.memory_space<vmem>>, %arg12: memref<2x16x128xf32, #tpu.memory_space<vmem>>) attributes {dimension_semantics = [#tpu.dimension_semantics<parallel>, #tpu.dimension_semantics<arbitrary>], iteration_bounds = array<i64: 1, 1>, scalar_prefetch = 0 : i64, scratch_operands = 1 : i64, tpu.core_type = #tpu.core_type<tc>, window_params = [{transform_indices = @transform_0, window_bounds = array<i64: 2, 16, 256>}, {pipeline_mode = #tpu.pipeline_mode<synchronous>, transform_indices = @transform_1, window_bounds = array<i64: 16, 4>}, {pipeline_mode = #tpu.pipeline_mode<synchronous>, transform_indices = @transform_2, window_bounds = array<i64: 1, 4>}, {pipeline_mode = #tpu.pipeline_mode<synchronous>, transform_indices = @transform_3, window_bounds = array<i64: 1, 4>}, {pipeline_mode = #tpu.pipeline_mode<synchronous>, transform_indices = @transform_4, window_bounds = array<i64: 1, 4>}, {pipeline_mode = #tpu.pipeline_mode<synchronous>, transform_indices = @transform_5, window_bounds = array<i64: 4, 8>}, {pipeline_mode = #tpu.pipeline_mode<synchronous>, transform_indices = @transform_6, window_bounds = array<i64: 1, 8>}, {pipeline_mode = #tpu.pipeline_mode<synchronous>, transform_indices = @transform_7, window_bounds = array<i64: 1, 8>}, {pipeline_mode = #tpu.pipeline_mode<synchronous>, transform_indices = @transform_8, window_bounds = array<i64: 1, 8>}, {transform_indices = @transform_9, window_bounds = array<i64: 2, 1, 8>}]} {
    %c0_i32 = arith.constant 0 : i32
    %0 = arith.cmpi eq, %arg1, %c0_i32 : i32
    %1 = arith.extui %0 : i1 to i32
    %c0_i32_0 = arith.constant 0 : i32
    %2 = arith.cmpi ne, %1, %c0_i32_0 : i32
    scf.if %2 {
      %cst = arith.constant 0.000000e+00 : f32
      %14 = vector.broadcast %cst : f32 to vector<2x16x128xf32>
      %c0_19 = arith.constant 0 : index
      %c0_20 = arith.constant 0 : index
      %c0_21 = arith.constant 0 : index
      %15 = vector.load %arg12[%c0_19, %c0_20, %c0_21] : memref<2x16x128xf32, #tpu.memory_space<vmem>>, vector<2x16x128xf32>
      tpu.vector_store %arg12[%c0_19, %c0_20, %c0_21], %14 {strides = array<i32>} : memref<2x16x128xf32, #tpu.memory_space<vmem>>, vector<2x16x128xf32>,
    } else {
    }
    %c0 = arith.constant 0 : index
    %c0_1 = arith.constant 0 : index
    %c0_2 = arith.constant 0 : index
    %3 = vector.load %arg12[%c0, %c0_1, %c0_2] : memref<2x16x128xf32, #tpu.memory_space<vmem>>, vector<2x16x128xf32>
    %c0_3 = arith.constant 0 : index
    %c0_4 = arith.constant 0 : index
    %c0_5 = arith.constant 0 : index
    %4 = vector.load %arg2[%c0_3, %c0_4, %c0_5] : memref<2x16x256xf32, #tpu.memory_space<vmem>>, vector<2x16x128xf32>
    %5 = arith.addf %3, %4 : vector<2x16x128xf32>
    %c0_6 = arith.constant 0 : index
    %c0_7 = arith.constant 0 : index
    %c0_8 = arith.constant 0 : index
    %6 = vector.load %arg12[%c0_6, %c0_7, %c0_8] : memref<2x16x128xf32, #tpu.memory_space<vmem>>, vector<2x16x128xf32>
    tpu.vector_store %arg12[%c0_6, %c0_7, %c0_8], %5 {strides = array<i32>} : memref<2x16x128xf32, #tpu.memory_space<vmem>>, vector<2x16x128xf32>,
    %c0_9 = arith.constant 0 : index
    %c0_10 = arith.constant 0 : index
    %c0_11 = arith.constant 0 : index
    %7 = vector.load %arg12[%c0_9, %c0_10, %c0_11] : memref<2x16x128xf32, #tpu.memory_space<vmem>>, vector<2x16x128xf32>
    %c0_12 = arith.constant 0 : index
    %c0_13 = arith.constant 0 : index
    %c128 = arith.constant 128 : index
    %8 = vector.load %arg2[%c0_12, %c0_13, %c128] : memref<2x16x256xf32, #tpu.memory_space<vmem>>, vector<2x16x128xf32>
    %9 = arith.addf %7, %8 : vector<2x16x128xf32>
    %c0_14 = arith.constant 0 : index
    %c0_15 = arith.constant 0 : index
    %c0_16 = arith.constant 0 : index
    %10 = vector.load %arg12[%c0_14, %c0_15, %c0_16] : memref<2x16x128xf32, #tpu.memory_space<vmem>>, vector<2x16x128xf32>
    tpu.vector_store %arg12[%c0_14, %c0_15, %c0_16], %9 {strides = array<i32>} : memref<2x16x128xf32, #tpu.memory_space<vmem>>, vector<2x16x128xf32>,
    %c0_i32_17 = arith.constant 0 : i32
    %11 = arith.cmpi eq, %arg1, %c0_i32_17 : i32
    %12 = arith.extui %11 : i1 to i32
    %c0_i32_18 = arith.constant 0 : i32
    %13 = arith.cmpi ne, %12, %c0_i32_18 : i32
    scf.if %13 {
      %c0_19 = arith.constant 0 : index
      %c0_20 = arith.constant 0 : index
      %c0_21 = arith.constant 0 : index
      %14 = vector.load %arg12[%c0_19, %c0_20, %c0_21] : memref<2x16x128xf32, #tpu.memory_space<vmem>>, vector<2x16x128xf32>
      %cst = arith.constant dense<0.000000e+00> : vector<2x16xf32>
      %15 = vector.multi_reduction <add>, %14, %cst [2] : vector<2x16x128xf32> to vector<2x16xf32>
      %cst_22 = arith.constant 3.906250e-03 : f32
      %16 = vector.broadcast %cst_22 : f32 to vector<2x16xf32>
      %17 = arith.mulf %15, %16 : vector<2x16xf32>
      %c0_23 = arith.constant 0 : index
      %c0_24 = arith.constant 0 : index
      %18 = vector.load %arg3[%c0_23, %c0_24] : memref<16x4xf32, #tpu.memory_space<vmem>>, vector<16x4xf32>
      %cst_25 = arith.constant dense<0.000000e+00> : vector<2x4xf32>
      %19 = tpu.matmul %17, %18, %cst_25 {dimension_numbers = #tpu.dot_dimension_numbers<[1], [0], [0], [1], [0, 0, 1, 1], [], []>, precision = #tpu.contract_precision<fp32>} : vector<2x16xf32>, vector<16x4xf32>, vector<2x4xf32> -> vector<2x4xf32>
      %c0_26 = arith.constant 0 : index
      %c0_27 = arith.constant 0 : index
      %20 = vector.load %arg4[%c0_26, %c0_27] : memref<1x4xf32, #tpu.memory_space<vmem>>, vector<1x4xf32>
      %21 = vector.broadcast %20 : vector<1x4xf32> to vector<2x4xf32>
      %22 = arith.addf %19, %21 : vector<2x4xf32>
      %cst_28 = arith.constant dense<0.000000e+00> : vector<2xf32>
      %23 = vector.multi_reduction <add>, %22, %cst_28 [1] : vector<2x4xf32> to vector<2xf32>
      %24 = vector.shape_cast %23 : vector<2xf32> to vector<2x1xf32>
      %cst_29 = arith.constant 4.000000e+00 : f32
      %25 = vector.broadcast %cst_29 : f32 to vector<2x1xf32>
      %26 = arith.divf %24, %25 : vector<2x1xf32>
      %27 = vector.broadcast %26 : vector<2x1xf32> to vector<2x4xf32>
      %28 = arith.subf %22, %27 : vector<2x4xf32>
      %29 = vector.broadcast %26 : vector<2x1xf32> to vector<2x4xf32>
      %30 = arith.subf %22, %29 : vector<2x4xf32>
      %31 = arith.mulf %28, %30 : vector<2x4xf32>
      %cst_30 = arith.constant dense<0.000000e+00> : vector<2xf32>
      %32 = vector.multi_reduction <add>, %31, %cst_30 [1] : vector<2x4xf32> to vector<2xf32>
      %33 = vector.shape_cast %32 : vector<2xf32> to vector<2x1xf32>
      %cst_31 = arith.constant 4.000000e+00 : f32
      %34 = vector.broadcast %cst_31 : f32 to vector<2x1xf32>
      %35 = arith.divf %33, %34 : vector<2x1xf32>
      %c0_32 = arith.constant 0 : index
      %c0_33 = arith.constant 0 : index
      %36 = vector.load %arg5[%c0_32, %c0_33] : memref<1x4xf32, #tpu.memory_space<vmem>>, vector<1x4xf32>
      %cst_34 = arith.constant 9.99999974E-6 : f32
      %37 = vector.broadcast %cst_34 : f32 to vector<2x1xf32>
      %38 = arith.addf %35, %37 : vector<2x1xf32>
      %39 = math.rsqrt %38 : vector<2x1xf32>
      %40 = vector.broadcast %36 : vector<1x4xf32> to vector<2x4xf32>
      %41 = vector.broadcast %39 : vector<2x1xf32> to vector<2x4xf32>
      %42 = arith.mulf %40, %41 : vector<2x4xf32>
      %43 = arith.mulf %22, %42 : vector<2x4xf32>
      %c0_35 = arith.constant 0 : index
      %c0_36 = arith.constant 0 : index
      %44 = vector.load %arg6[%c0_35, %c0_36] : memref<1x4xf32, #tpu.memory_space<vmem>>, vector<1x4xf32>
      %45 = vector.broadcast %26 : vector<2x1xf32> to vector<2x4xf32>
      %46 = arith.mulf %45, %42 : vector<2x4xf32>
      %47 = vector.broadcast %44 : vector<1x4xf32> to vector<2x4xf32>
      %48 = arith.subf %47, %46 : vector<2x4xf32>
      %49 = arith.addf %43, %48 : vector<2x4xf32>
      %cst_37 = arith.constant 0.000000e+00 : f32
      %50 = vector.broadcast %cst_37 : f32 to vector<2x4xf32>
      %51 = arith.maximumf %49, %50 : vector<2x4xf32>
      %c0_38 = arith.constant 0 : index
      %c0_39 = arith.constant 0 : index
      %52 = vector.load %arg7[%c0_38, %c0_39] : memref<4x8xf32, #tpu.memory_space<vmem>>, vector<4x8xf32>
      %cst_40 = arith.constant dense<0.000000e+00> : vector<2x8xf32>
      %53 = tpu.matmul %51, %52, %cst_40 {dimension_numbers = #tpu.dot_dimension_numbers<[1], [0], [0], [1], [0, 0, 1, 1], [], []>, precision = #tpu.contract_precision<fp32>} : vector<2x4xf32>, vector<4x8xf32>, vector<2x8xf32> -> vector<2x8xf32>
      %c0_41 = arith.constant 0 : index
      %c0_42 = arith.constant 0 : index
      %54 = vector.load %arg8[%c0_41, %c0_42] : memref<1x8xf32, #tpu.memory_space<vmem>>, vector<1x8xf32>
      %55 = vector.broadcast %54 : vector<1x8xf32> to vector<2x8xf32>
      %56 = arith.addf %53, %55 : vector<2x8xf32>
      %cst_43 = arith.constant dense<0.000000e+00> : vector<2xf32>
      %57 = vector.multi_reduction <add>, %56, %cst_43 [1] : vector<2x8xf32> to vector<2xf32>
      %58 = vector.shape_cast %57 : vector<2xf32> to vector<2x1xf32>
      %cst_44 = arith.constant 8.000000e+00 : f32
      %59 = vector.broadcast %cst_44 : f32 to vector<2x1xf32>
      %60 = arith.divf %58, %59 : vector<2x1xf32>
      %61 = vector.broadcast %60 : vector<2x1xf32> to vector<2x8xf32>
      %62 = arith.subf %56, %61 : vector<2x8xf32>
      %63 = vector.broadcast %60 : vector<2x1xf32> to vector<2x8xf32>
      %64 = arith.subf %56, %63 : vector<2x8xf32>
      %65 = arith.mulf %62, %64 : vector<2x8xf32>
      %cst_45 = arith.constant dense<0.000000e+00> : vector<2xf32>
      %66 = vector.multi_reduction <add>, %65, %cst_45 [1] : vector<2x8xf32> to vector<2xf32>
      %67 = vector.shape_cast %66 : vector<2xf32> to vector<2x1xf32>
      %cst_46 = arith.constant 8.000000e+00 : f32
      %68 = vector.broadcast %cst_46 : f32 to vector<2x1xf32>
      %69 = arith.divf %67, %68 : vector<2x1xf32>
      %c0_47 = arith.constant 0 : index
      %c0_48 = arith.constant 0 : index
      %70 = vector.load %arg9[%c0_47, %c0_48] : memref<1x8xf32, #tpu.memory_space<vmem>>, vector<1x8xf32>
      %cst_49 = arith.constant 9.99999974E-6 : f32
      %71 = vector.broadcast %cst_49 : f32 to vector<2x1xf32>
      %72 = arith.addf %69, %71 : vector<2x1xf32>
      %73 = math.rsqrt %72 : vector<2x1xf32>
      %74 = vector.broadcast %70 : vector<1x8xf32> to vector<2x8xf32>
      %75 = vector.broadcast %73 : vector<2x1xf32> to vector<2x8xf32>
      %76 = arith.mulf %74, %75 : vector<2x8xf32>
      %77 = arith.mulf %56, %76 : vector<2x8xf32>
      %c0_50 = arith.constant 0 : index
      %c0_51 = arith.constant 0 : index
      %78 = vector.load %arg10[%c0_50, %c0_51] : memref<1x8xf32, #tpu.memory_space<vmem>>, vector<1x8xf32>
      %79 = vector.broadcast %60 : vector<2x1xf32> to vector<2x8xf32>
      %80 = arith.mulf %79, %76 : vector<2x8xf32>
      %81 = vector.broadcast %78 : vector<1x8xf32> to vector<2x8xf32>
      %82 = arith.subf %81, %80 : vector<2x8xf32>
      %83 = arith.addf %77, %82 : vector<2x8xf32>
      %84 = arith.negf %83 : vector<2x8xf32>
      %85 = math.exp %84 : vector<2x8xf32>
      %cst_52 = arith.constant 1.000000e+00 : f32
      %86 = vector.broadcast %cst_52 : f32 to vector<2x8xf32>
      %87 = arith.addf %86, %85 : vector<2x8xf32>
      %88 = arith.divf %86, %87 : vector<2x8xf32>
      %89 = vector.shape_cast %88 : vector<2x8xf32> to vector<2x1x8xf32>
      %c0_53 = arith.constant 0 : index
      %c0_54 = arith.constant 0 : index
      %c0_55 = arith.constant 0 : index
      %90 = vector.load %arg11[%c0_53, %c0_54, %c0_55] : memref<2x1x8xf32, #tpu.memory_space<vmem>>, vector<2x1x8xf32>
      tpu.vector_store %arg11[%c0_53, %c0_54, %c0_55], %89 {strides = array<i32>} : memref<2x1x8xf32, #tpu.memory_space<vmem>>, vector<2x1x8xf32>,
    } else {
    }
    return
  }
  func.func @transform_0(%arg0: i32, %arg1: i32) -> (i32, i32, i32) {
    %c0_i32 = arith.constant 0 : i32
    %c0_i32_0 = arith.constant 0 : i32
    return %arg0, %c0_i32, %arg1 : i32, i32, i32
  }
  func.func @transform_1(%arg0: i32, %arg1: i32) -> (i32, i32) {
    %c0_i32 = arith.constant 0 : i32
    %c0_i32_0 = arith.constant 0 : i32
    %c0_i32_1 = arith.constant 0 : i32
    return %c0_i32, %c0_i32_0 : i32, i32
  }
  func.func @transform_2(%arg0: i32, %arg1: i32) -> (i32, i32) {
    %c0_i32 = arith.constant 0 : i32
    %c0_i32_0 = arith.constant 0 : i32
    %c0_i32_1 = arith.constant 0 : i32
    return %c0_i32, %c0_i32_0 : i32, i32
  }
  func.func @transform_3(%arg0: i32, %arg1: i32) -> (i32, i32) {
    %c0_i32 = arith.constant 0 : i32
    %c0_i32_0 = arith.constant 0 : i32
    %c0_i32_1 = arith.constant 0 : i32
    return %c0_i32, %c0_i32_0 : i32, i32
  }
  func.func @transform_4(%arg0: i32, %arg1: i32) -> (i32, i32) {
    %c0_i32 = arith.constant 0 : i32
    %c0_i32_0 = arith.constant 0 : i32
    %c0_i32_1 = arith.constant 0 : i32
    return %c0_i32, %c0_i32_0 : i32, i32
  }
  func.func @transform_5(%arg0: i32, %arg1: i32) -> (i32, i32) {
    %c0_i32 = arith.constant 0 : i32
    %c0_i32_0 = arith.constant 0 : i32
    %c0_i32_1 = arith.constant 0 : i32
    return %c0_i32, %c0_i32_0 : i32, i32
  }
  func.func @transform_6(%arg0: i32, %arg1: i32) -> (i32, i32) {
    %c0_i32 = arith.constant 0 : i32
    %c0_i32_0 = arith.constant 0 : i32
    %c0_i32_1 = arith.constant 0 : i32
    return %c0_i32, %c0_i32_0 : i32, i32
  }
  func.func @transform_7(%arg0: i32, %arg1: i32) -> (i32, i32) {
    %c0_i32 = arith.constant 0 : i32
    %c0_i32_0 = arith.constant 0 : i32
    %c0_i32_1 = arith.constant 0 : i32
    return %c0_i32, %c0_i32_0 : i32, i32
  }
  func.func @transform_8(%arg0: i32, %arg1: i32) -> (i32, i32) {
    %c0_i32 = arith.constant 0 : i32
    %c0_i32_0 = arith.constant 0 : i32
    %c0_i32_1 = arith.constant 0 : i32
    return %c0_i32, %c0_i32_0 : i32, i32
  }
  func.func @transform_9(%arg0: i32, %arg1: i32) -> (i32, i32, i32) {
    %c0_i32 = arith.constant 0 : i32
    %c0_i32_0 = arith.constant 0 : i32
    %c0_i32_1 = arith.constant 0 : i32
    return %arg0, %c0_i32, %c0_i32_0 : i32, i32, i32
  }
}

</mosaic_0001>

<llo_original>
// kernel: tpu_custom_call.1
$region0: #{tpu_custom_call.1}
  #allocation0 [shape = 'u32[]', space=smem, size = 0x4, offset = 0x4, fixed_abs, tag = 'smem constant byte address 0x4 - core index']
  #allocation1 [shape = 'u32[144,128]{1,0:T(1,128)}', space=vmem, size = 0x12000, scoped, tag = 'internal scratch']
  #allocation2 [shape = 'f32[2,16,128]{2,1,0:T(8,128)}', space=vmem, size = 0x4000, scoped, tag = 'scratch operand']
  %s0 = inlined_call_operand.hbm [shape: f32[2,16,256], index: 0, kind: input, shape index: {}]
  %s1 = inlined_call_operand.vmem [shape: f32[16,4], index: 1, kind: input, shape index: {}]
  %s2 = inlined_call_operand.vmem [shape: f32[1,4], index: 2, kind: input, shape index: {}]
  %s3 = inlined_call_operand.vmem [shape: f32[1,4], index: 3, kind: input, shape index: {}]
  %s4 = inlined_call_operand.vmem [shape: f32[1,4], index: 4, kind: input, shape index: {}]
  %s5 = inlined_call_operand.vmem [shape: f32[4,8], index: 5, kind: input, shape index: {}]
  %s6 = inlined_call_operand.vmem [shape: f32[1,8], index: 6, kind: input, shape index: {}]
  %s7 = inlined_call_operand.vmem [shape: f32[1,8], index: 7, kind: input, shape index: {}]
  %s8 = inlined_call_operand.vmem [shape: f32[1,8], index: 8, kind: input, shape index: {}]
  %s9 = inlined_call_operand.hbm [shape: f32[2,1,8], index: 9, kind: output, shape index: {}]
  %s10 = sld [smem:[#allocation0]]
  $region58: #{tpu_custom_call.1} parent=0
    _
  %s12 = ssub.s32 1, %s10
  %s13 = scalar_select 0, %s12, %s10
  $region1: #{tpu_custom_call.1} parent=0
    #allocation3 [shape = 'u8[32768]{0}', space=vmem, size = 0x8000, scoped, tag = 'input window, operand 0, single buffered']
    #allocation4 [shape = 's32[1]{0}', space=sflag, size = 0x4, scoped, tag = 'scoped memory for tpu_custom_call.1']
    #allocation5 [shape = 's32[1]{0}', space=sflag, size = 0x4, scoped, tag = 'scoped memory for tpu_custom_call.1']
    #allocation6 [shape = 'u8[1024]{0}', space=vmem, size = 0x400, scoped, tag = 'output window, operand 0, single buffered']
    %14 = vsyncpa [#allocation4], 0
    %15 = vsyncpa [#allocation5], 0
    // Predicated region
    $region2: #{tpu_custom_call.1} parent=1 // pred_check
      _
    $region3: #{tpu_custom_call.1} parent=1 // pred_check_branch
      %17 = sbr.rel (0) target = $region5
    $region4: #{tpu_custom_call.1} parent=1 // pred_region
      %s19 = ssub.s32 1024, 1024
      %20 = vsyncadd [#allocation4], %s19
      %s21 = sshll.u32 [#allocation3], 4
      %s22 = int_to_ptr.vmem [resolvable:$true] %s21
      %27 = dma.hbm_to_vmem [thread:$0]  %s0, 1024, %s22, [#allocation4], 256, 256, 16
    $region5: #{tpu_custom_call.1} parent=1 // pred_fallthru
      _
    // Predicated region
    $region6: #{tpu_custom_call.1} parent=1 // pred_check
      _
    $region7: #{tpu_custom_call.1} parent=1 // pred_check_branch
      %29 = sbr.rel (0) target = $region9
    $region8: #{tpu_custom_call.1} parent=1 // pred_region
      _
    $region9: #{tpu_custom_call.1} parent=1 // pred_fallthru
      _
    // Predicated region
    $region10: #{tpu_custom_call.1} parent=1 // pred_check
      _
    $region11: #{tpu_custom_call.1} parent=1 // pred_check_branch
      %31 = sbr.rel (0) target = $region13
    $region12: #{tpu_custom_call.1} parent=1 // pred_region
      _
    $region13: #{tpu_custom_call.1} parent=1 // pred_fallthru
      _
    // Predicated region
    $region14: #{tpu_custom_call.1} parent=1 // pred_check
      _
    $region15: #{tpu_custom_call.1} parent=1 // pred_check_branch
      %33 = sbr.rel (0) target = $region17
    $region16: #{tpu_custom_call.1} parent=1 // pred_region
      _
    $region17: #{tpu_custom_call.1} parent=1 // pred_fallthru
      _
    // Predicated region
    $region18: #{tpu_custom_call.1} parent=1 // pred_check
      _
    $region19: #{tpu_custom_call.1} parent=1 // pred_check_branch
      %35 = sbr.rel (0) target = $region21
    $region20: #{tpu_custom_call.1} parent=1 // pred_region
      _
    $region21: #{tpu_custom_call.1} parent=1 // pred_fallthru
      _
    // Predicated region
    $region22: #{tpu_custom_call.1} parent=1 // pred_check
      _
    $region23: #{tpu_custom_call.1} parent=1 // pred_check_branch
      %37 = sbr.rel (0) target = $region25
    $region24: #{tpu_custom_call.1} parent=1 // pred_region
      _
    $region25: #{tpu_custom_call.1} parent=1 // pred_fallthru
      _
    // Predicated region
    $region26: #{tpu_custom_call.1} parent=1 // pred_check
      _
    $region27: #{tpu_custom_call.1} parent=1 // pred_check_branch
      %39 = sbr.rel (0) target = $region29
    $region28: #{tpu_custom_call.1} parent=1 // pred_region
      _
    $region29: #{tpu_custom_call.1} parent=1 // pred_fallthru
      _
    // Predicated region
    $region30: #{tpu_custom_call.1} parent=1 // pred_check
      _
    $region31: #{tpu_custom_call.1} parent=1 // pred_check_branch
      %41 = sbr.rel (0) target = $region33
    $region32: #{tpu_custom_call.1} parent=1 // pred_region
      _
    $region33: #{tpu_custom_call.1} parent=1 // pred_fallthru
      _
    // Predicated region
    $region34: #{tpu_custom_call.1} parent=1 // pred_check
      _
    $region35: #{tpu_custom_call.1} parent=1 // pred_check_branch
      %43 = sbr.rel (0) target = $region37
    $region36: #{tpu_custom_call.1} parent=1 // pred_region
      _
    $region37: #{tpu_custom_call.1} parent=1 // pred_fallthru
      _
    // Predicated region
    $region38: #{tpu_custom_call.1} parent=1 // pred_check
      _
    $region39: #{tpu_custom_call.1} parent=1 // pred_check_branch
      %45 = sbr.rel (0) target = $region41
    $region40: #{tpu_custom_call.1} parent=1 // pred_region
      %46 = dma.done [#allocation4], 1024
    $region41: #{tpu_custom_call.1} parent=1 // pred_fallthru
      _
    %p47 = scmp.eq.s32.totalorder 0, 0
    // Predicated region
    $region42: #{tpu_custom_call.1} parent=1 // pred_check
      %p48 = pneg %p47
    $region43: #{tpu_custom_call.1} parent=1 // pred_check_branch
      %50 = sbr.rel (%p48) target = $region45
    $region44: #{tpu_custom_call.1} parent=1 // pred_region
      %51 = vst [vmem:[#allocation2] sm:$0xff] 0.0
      %52 = vst [vmem:[#allocation2 + $0x8] sm:$0xff] 0.0
      %53 = vst [vmem:[#allocation2 + $0x10] sm:$0xff] 0.0
      %54 = vst [vmem:[#allocation2 + $0x18] sm:$0xff] 0.0
    $region45: #{tpu_custom_call.1} parent=1 // pred_fallthru
      _
    %v55 = vld [vmem:[#allocation2] sm:$0xff]
    %v56 = vld [vmem:[#allocation2 + $0x8] sm:$0xff]
    %v57 = vld [vmem:[#allocation2 + $0x10] sm:$0xff]
    %v58 = vld [vmem:[#allocation2 + $0x18] sm:$0xff]
    %v59 = vld [vmem:[#allocation3] sm:$0xff]
    %v60 = vld [vmem:[#allocation3 + $0x10] sm:$0xff]
    %v61 = vld [vmem:[#allocation3 + $0x20] sm:$0xff]
    %v62 = vld [vmem:[#allocation3 + $0x30] sm:$0xff]
    %v63 = vadd.f32 %v55, %v59
    %v64 = vadd.f32 %v56, %v60
    %v65 = vadd.f32 %v57, %v61
    %v66 = vadd.f32 %v58, %v62
    %67 = vst [vmem:[#allocation2] sm:$0xff] %v63
    %68 = vst [vmem:[#allocation2 + $0x8] sm:$0xff] %v64
    %69 = vst [vmem:[#allocation2 + $0x10] sm:$0xff] %v65
    %70 = vst [vmem:[#allocation2 + $0x18] sm:$0xff] %v66
    %v71 = vld [vmem:[#allocation2] sm:$0xff]
    %v72 = vld [vmem:[#allocation2 + $0x8] sm:$0xff]
    %v73 = vld [vmem:[#allocation2 + $0x10] sm:$0xff]
    %v74 = vld [vmem:[#allocation2 + $0x18] sm:$0xff]
    %v75 = vld [vmem:[#allocation3 + $0x8] sm:$0xff]
    %v76 = vld [vmem:[#allocation3 + $0x18] sm:$0xff]
    %v77 = vld [vmem:[#allocation3 + $0x28] sm:$0xff]
    %v78 = vld [vmem:[#allocation3 + $0x38] sm:$0xff]
    %v79 = vadd.f32 %v71, %v75
    %v80 = vadd.f32 %v72, %v76
    %v81 = vadd.f32 %v73, %v77
    %v82 = vadd.f32 %v74, %v78
    %83 = vst [vmem:[#allocation2] sm:$0xff] %v79
    %84 = vst [vmem:[#allocation2 + $0x8] sm:$0xff] %v80
    %85 = vst [vmem:[#allocation2 + $0x10] sm:$0xff] %v81
    %86 = vst [vmem:[#allocation2 + $0x18] sm:$0xff] %v82
    // Predicated region
    $region46: #{tpu_custom_call.1} parent=1 // pred_check
      %p87 = pneg %p47
    $region47: #{tpu_custom_call.1} parent=1 // pred_check_branch
      %89 = sbr.rel (%p87) target = $region49
    $region48: #{tpu_custom_call.1} parent=1 // pred_region
      %v90 = vld [vmem:[#allocation2] sm:$0xff]
      %v91 = vld [vmem:[#allocation2 + $0x8] sm:$0xff]
      %v92 = vld [vmem:[#allocation2 + $0x10] sm:$0xff]
      %v93 = vld [vmem:[#allocation2 + $0x18] sm:$0xff]
      %94 = vadd.xlane.f32.xlu0 %v90
      %v95 = vpop.xlane.xlu0 %94
      %96 = vadd.xlane.f32.xlu0 %v91
      %v97 = vpop.xlane.xlu0 %96
      %98 = vadd.xlane.f32.xlu0 %v92
      %v99 = vpop.xlane.xlu0 %98
      %100 = vadd.xlane.f32.xlu0 %v93
      %v101 = vpop.xlane.xlu0 %100
      %v102 = vmul.f32 %v95, 0.00390625
      %v103 = vmul.f32 %v97, 0.00390625
      %v104 = vmul.f32 %v99, 0.00390625
      %v105 = vmul.f32 %v101, 0.00390625
      %v106 = vld [vmem:[%s1] sm:$0xff]
      %v107 = vld [vmem:[%s1 + $0x8] sm:$0xff]
      %v108 = vld [vmem:[%s2] sm:$0x1]
      %v110 = vlaneseq
      %v111 = vshrl.u32 %v110, 7
      %v112 = vsub.s32 0, %v111
      %v113 = vrot.slane %v108, %v112
      %v119 = vlaneseq
      %v120 = vand.u32 %v119, 127
      %v121 = vlaneseq
      %v122 = vshrl.u32 %v121, 7
      %v123 = vsub.s32 %v120, %v122
      %v124 = vrot.slane %v102, %v123
      %v125 = vadd.s32 %v120, 4294967288
      %v126 = vlaneseq
      %v127 = vshrl.u32 %v126, 7
      %v128 = vsub.s32 %v125, %v127
      %v129 = vrot.slane %v103, %v128
      %vm130 = vcmask 130112
      %v131 = vsel %vm130, %v129, %v124
      %v132 = vlaneseq
      %v133 = vshrl.u32 %v132, 7
      %v134 = vsub.s32 %v120, %v133
      %v135 = vrot.slane %v104, %v134
      %v136 = vlaneseq
      %v137 = vshrl.u32 %v136, 7
      %v138 = vsub.s32 %v125, %v137
      %v139 = vrot.slane %v105, %v138
      %v140 = vsel %vm130, %v139, %v135
      %vm141 = vcmask 1041409
      %v142 = vsel %vm141, %v140, %v131
      %vm143 = vcmask 130048
      %v144 = vsel %vm143, %v142, 0
      %146 = vmatprep.subr.mxu0 0.0
      %v147 = vand.u32 %v106, 4294901760
      %148 = vmatpush1.msra.mxu0 %v147
      %149 = vmatprep.subr.mxu0 0.0
      %v150 = vand.u32 %v107, 4294901760
      %151 = vmatpush1.msra.mxu0 %v150
      %152 = vmatprep.subr.mxu0 0.0
      %153 = vmatpush1.msra.mxu0 0.0
      %154 = vmatprep.subr.mxu0 0.0
      %155 = vmatpush1.msra.mxu0 0.0
      %156 = vmatprep.subr.mxu0 0.0
      %157 = vmatpush1.msra.mxu0 0.0
      %158 = vmatprep.subr.mxu0 0.0
      %159 = vmatpush1.msra.mxu0 0.0
      %160 = vmatprep.subr.mxu0 0.0
      %161 = vmatpush1.msra.mxu0 0.0
      %162 = vmatprep.subr.mxu0 0.0
      %163 = vmatpush1.msra.mxu0 0.0
      %164 = vmatprep.subr.mxu0 0.0
      %165 = vmatpush1.msra.mxu0 0.0
      %166 = vmatprep.subr.mxu0 0.0
      %167 = vmatpush1.msra.mxu0 0.0
      %168 = vmatprep.subr.mxu0 0.0
      %169 = vmatpush1.msra.mxu0 0.0
      %170 = vmatprep.subr.mxu0 0.0
      %171 = vmatpush1.msra.mxu0 0.0
      %172 = vmatprep.subr.mxu0 0.0
      %173 = vmatpush1.msra.mxu0 0.0
      %174 = vmatprep.subr.mxu0 0.0
      %175 = vmatpush1.msra.mxu0 0.0
      %176 = vmatprep.subr.mxu0 0.0
      %177 = vmatpush1.msra.mxu0 0.0
      %178 = vmatprep.subr.mxu0 0.0
      %179 = vmatpush1.msra.mxu0 0.0
      %180 = vmatprep.subr.mxu0 0.0
      %181 = vmatpush1.msra.mxu0 0.0
      %182 = vmatprep.subr.mxu0 0.0
      %183 = vmatpush1.msra.mxu0 0.0
      %184 = vmatprep.subr.mxu0 0.0
      %185 = vmatpush1.msra.mxu0 0.0
      %186 = vmatprep.subr.mxu0 0.0
      %187 = vmatpush1.msra.mxu0 0.0
      %188 = vmatprep.subr.mxu0 0.0
      %189 = vmatpush1.msra.mxu0 0.0
      %190 = vmatprep.subr.mxu0 0.0
      %191 = vmatpush1.msra.mxu0 0.0
      %192 = vmatprep.subr.mxu0 0.0
      %193 = vmatpush1.msra.mxu0 0.0
      %194 = vmatprep.subr.mxu0 0.0
      %195 = vmatpush1.msra.mxu0 0.0
      %196 = vmatprep.subr.mxu0 0.0
      %197 = vmatpush1.msra.mxu0 0.0
      %198 = vmatprep.subr.mxu0 0.0
      %199 = vmatpush1.msra.mxu0 0.0
      %200 = vmatprep.subr.mxu0 0.0
      %201 = vmatpush1.msra.mxu0 0.0
      %202 = vmatprep.subr.mxu0 0.0
      %203 = vmatpush1.msra.mxu0 0.0
      %204 = vmatprep.subr.mxu0 0.0
      %205 = vmatpush1.msra.mxu0 0.0
      %206 = vmatprep.subr.mxu0 0.0
      %207 = vmatpush1.msra.mxu0 0.0
      %208 = vmatprep.subr.mxu0 0.0
      %209 = vmatpush1.msra.mxu0 0.0
      %210 = vmatprep.subr.mxu0 0.0
      %211 = vmatpush1.msra.mxu0 0.0
      %212 = vmatprep.mubr.f32.mxu0 0.0
      %v213 = vand.u32 %v144, 4294901760
      %v214 = vsub.f32 %v144, %v213
      %v215 = vand.u32 %v214, 4294901760
      %v216 = vsub.f32 %v214, %v215
      %v217 = vand.u32 %v216, 4294901760
      %218 = vmatmul.mubr.f32.gmra.mrb[0].mxu0 %v217
      %v219 = vpop.f32.mrb[0].mxu0
      %v220 = vadd.f32 %v113, %v219
      %v221 = vpop.f32.mrb[0].mxu0
      %222 = vdwg.mxu0
      %223 = vmatprep.subr.mxu0 0.0
      %v224 = vand.u32 %v106, 4294901760
      %v225 = vsub.f32 %v106, %v224
      %v226 = vand.u32 %v225, 4294901760
      %v227 = vsub.f32 %v225, %v226
      %v228 = vand.u32 %v227, 4294901760
      %229 = vmatpush1.msra.mxu0 %v228
      %230 = vmatprep.subr.mxu0 0.0
      %v231 = vand.u32 %v107, 4294901760
      %v232 = vsub.f32 %v107, %v231
      %v233 = vand.u32 %v232, 4294901760
      %v234 = vsub.f32 %v232, %v233
      %v235 = vand.u32 %v234, 4294901760
      %236 = vmatpush1.msra.mxu0 %v235
      %237 = vmatprep.subr.mxu0 0.0
      %238 = vmatpush1.msra.mxu0 0.0
      %239 = vmatprep.subr.mxu0 0.0
      %240 = vmatpush1.msra.mxu0 0.0
      %241 = vmatprep.subr.mxu0 0.0
      %242 = vmatpush1.msra.mxu0 0.0
      %243 = vmatprep.subr.mxu0 0.0
      %244 = vmatpush1.msra.mxu0 0.0
      %245 = vmatprep.subr.mxu0 0.0
      %246 = vmatpush1.msra.mxu0 0.0
      %247 = vmatprep.subr.mxu0 0.0
      %248 = vmatpush1.msra.mxu0 0.0
      %249 = vmatprep.subr.mxu0 0.0
      %250 = vmatpush1.msra.mxu0 0.0
      %251 = vmatprep.subr.mxu0 0.0
      %252 = vmatpush1.msra.mxu0 0.0
      %253 = vmatprep.subr.mxu0 0.0
      %254 = vmatpush1.msra.mxu0 0.0
      %255 = vmatprep.subr.mxu0 0.0
      %256 = vmatpush1.msra.mxu0 0.0
      %257 = vmatprep.subr.mxu0 0.0
      %258 = vmatpush1.msra.mxu0 0.0
      %259 = vmatprep.subr.mxu0 0.0
      %260 = vmatpush1.msra.mxu0 0.0
      %261 = vmatprep.subr.mxu0 0.0
      %262 = vmatpush1.msra.mxu0 0.0
      %263 = vmatprep.subr.mxu0 0.0
      %264 = vmatpush1.msra.mxu0 0.0
      %265 = vmatprep.subr.mxu0 0.0
      %266 = vmatpush1.msra.mxu0 0.0
      %267 = vmatprep.subr.mxu0 0.0
      %268 = vmatpush1.msra.mxu0 0.0
      %269 = vmatprep.subr.mxu0 0.0
      %270 = vmatpush1.msra.mxu0 0.0
      %271 = vmatprep.subr.mxu0 0.0
      %272 = vmatpush1.msra.mxu0 0.0
      %273 = vmatprep.subr.mxu0 0.0
      %274 = vmatpush1.msra.mxu0 0.0
      %275 = vmatprep.subr.mxu0 0.0
      %276 = vmatpush1.msra.mxu0 0.0
      %277 = vmatprep.subr.mxu0 0.0
      %278 = vmatpush1.msra.mxu0 0.0
      %279 = vmatprep.subr.mxu0 0.0
      %280 = vmatpush1.msra.mxu0 0.0
      %281 = vmatprep.subr.mxu0 0.0
      %282 = vmatpush1.msra.mxu0 0.0
      %283 = vmatprep.subr.mxu0 0.0
      %284 = vmatpush1.msra.mxu0 0.0
      %285 = vmatprep.subr.mxu0 0.0
      %286 = vmatpush1.msra.mxu0 0.0
      %287 = vmatprep.subr.mxu0 0.0
      %288 = vmatpush1.msra.mxu0 0.0
      %289 = vmatprep.subr.mxu0 0.0
      %290 = vmatpush1.msra.mxu0 0.0
      %291 = vmatprep.subr.mxu0 0.0
      %292 = vmatpush1.msra.mxu0 0.0
      %293 = vmatprep.subr.mxu0 0.0
      %294 = vmatpush1.msra.mxu0 0.0
      %295 = vmatprep.subr.mxu0 0.0
      %296 = vmatpush1.msra.mxu0 0.0
      %297 = vmatprep.mubr.f32.mxu0 0.0
      %v298 = vand.u32 %v144, 4294901760
      %299 = vmatmul.mubr.f32.gmra.mrb[0].mxu0 %v298
      %v300 = vpop.f32.mrb[0].mxu0
      %v301 = vadd.f32 %v220, %v300
      %v302 = vpop.f32.mrb[0].mxu0
      %303 = vdwg.mxu0
      %304 = vmatprep.subr.mxu0 0.0
      %v305 = vand.u32 %v106, 4294901760
      %v306 = vsub.f32 %v106, %v305
      %307 = vmatpush1.msra.mxu0 %v306
      %308 = vmatprep.subr.mxu0 0.0
      %v309 = vand.u32 %v107, 4294901760
      %v310 = vsub.f32 %v107, %v309
      %311 = vmatpush1.msra.mxu0 %v310
      %312 = vmatprep.subr.mxu0 0.0
      %313 = vmatpush1.msra.mxu0 0.0
      %314 = vmatprep.subr.mxu0 0.0
      %315 = vmatpush1.msra.mxu0 0.0
      %316 = vmatprep.subr.mxu0 0.0
      %317 = vmatpush1.msra.mxu0 0.0
      %318 = vmatprep.subr.mxu0 0.0
      %319 = vmatpush1.msra.mxu0 0.0
      %320 = vmatprep.subr.mxu0 0.0
      %321 = vmatpush1.msra.mxu0 0.0
      %322 = vmatprep.subr.mxu0 0.0
      %323 = vmatpush1.msra.mxu0 0.0
      %324 = vmatprep.subr.mxu0 0.0
      %325 = vmatpush1.msra.mxu0 0.0
      %326 = vmatprep.subr.mxu0 0.0
      %327 = vmatpush1.msra.mxu0 0.0
      %328 = vmatprep.subr.mxu0 0.0
      %329 = vmatpush1.msra.mxu0 0.0
      %330 = vmatprep.subr.mxu0 0.0
      %331 = vmatpush1.msra.mxu0 0.0
      %332 = vmatprep.subr.mxu0 0.0
      %333 = vmatpush1.msra.mxu0 0.0
      %334 = vmatprep.subr.mxu0 0.0
      %335 = vmatpush1.msra.mxu0 0.0
      %336 = vmatprep.subr.mxu0 0.0
      %337 = vmatpush1.msra.mxu0 0.0
      %338 = vmatprep.subr.mxu0 0.0
      %339 = vmatpush1.msra.mxu0 0.0
      %340 = vmatprep.subr.mxu0 0.0
      %341 = vmatpush1.msra.mxu0 0.0
      %342 = vmatprep.subr.mxu0 0.0
      %343 = vmatpush1.msra.mxu0 0.0
      %344 = vmatprep.subr.mxu0 0.0
      %345 = vmatpush1.msra.mxu0 0.0
      %346 = vmatprep.subr.mxu0 0.0
      %347 = vmatpush1.msra.mxu0 0.0
      %348 = vmatprep.subr.mxu0 0.0
      %349 = vmatpush1.msra.mxu0 0.0
      %350 = vmatprep.subr.mxu0 0.0
      %351 = vmatpush1.msra.mxu0 0.0
      %352 = vmatprep.subr.mxu0 0.0
      %353 = vmatpush1.msra.mxu0 0.0
      %354 = vmatprep.subr.mxu0 0.0
      %355 = vmatpush1.msra.mxu0 0.0
      %356 = vmatprep.subr.mxu0 0.0
      %357 = vmatpush1.msra.mxu0 0.0
      %358 = vmatprep.subr.mxu0 0.0
      %359 = vmatpush1.msra.mxu0 0.0
      %360 = vmatprep.subr.mxu0 0.0
      %361 = vmatpush1.msra.mxu0 0.0
      %362 = vmatprep.subr.mxu0 0.0
      %363 = vmatpush1.msra.mxu0 0.0
      %364 = vmatprep.subr.mxu0 0.0
      %365 = vmatpush1.msra.mxu0 0.0
      %366 = vmatprep.subr.mxu0 0.0
      %367 = vmatpush1.msra.mxu0 0.0
      %368 = vmatprep.subr.mxu0 0.0
      %369 = vmatpush1.msra.mxu0 0.0
      %370 = vmatprep.subr.mxu0 0.0
      %371 = vmatpush1.msra.mxu0 0.0
      %372 = vmatprep.mubr.f32.mxu0 0.0
      %v373 = vand.u32 %v144, 4294901760
      %v374 = vsub.f32 %v144, %v373
      %375 = vmatmul.mubr.f32.gmra.mrb[0].mxu0 %v374
      %v376 = vpop.f32.mrb[0].mxu0
      %v377 = vadd.f32 %v301, %v376
      %v378 = vpop.f32.mrb[0].mxu0
      %379 = vdwg.mxu0
      %380 = vmatprep.subr.mxu0 0.0
      %v381 = vand.u32 %v106, 4294901760
      %382 = vmatpush1.msra.mxu0 %v381
      %383 = vmatprep.subr.mxu0 0.0
      %v384 = vand.u32 %v107, 4294901760
      %385 = vmatpush1.msra.mxu0 %v384
      %386 = vmatprep.subr.mxu0 0.0
      %387 = vmatpush1.msra.mxu0 0.0
      %388 = vmatprep.subr.mxu0 0.0
      %389 = vmatpush1.msra.mxu0 0.0
      %390 = vmatprep.subr.mxu0 0.0
      %391 = vmatpush1.msra.mxu0 0.0
      %392 = vmatprep.subr.mxu0 0.0
      %393 = vmatpush1.msra.mxu0 0.0
      %394 = vmatprep.subr.mxu0 0.0
      %395 = vmatpush1.msra.mxu0 0.0
      %396 = vmatprep.subr.mxu0 0.0
      %397 = vmatpush1.msra.mxu0 0.0
      %398 = vmatprep.subr.mxu0 0.0
      %399 = vmatpush1.msra.mxu0 0.0
      %400 = vmatprep.subr.mxu0 0.0
      %401 = vmatpush1.msra.mxu0 0.0
      %402 = vmatprep.subr.mxu0 0.0
      %403 = vmatpush1.msra.mxu0 0.0
      %404 = vmatprep.subr.mxu0 0.0
      %405 = vmatpush1.msra.mxu0 0.0
      %406 = vmatprep.subr.mxu0 0.0
      %407 = vmatpush1.msra.mxu0 0.0
      %408 = vmatprep.subr.mxu0 0.0
      %409 = vmatpush1.msra.mxu0 0.0
      %410 = vmatprep.subr.mxu0 0.0
      %411 = vmatpush1.msra.mxu0 0.0
      %412 = vmatprep.subr.mxu0 0.0
      %413 = vmatpush1.msra.mxu0 0.0
      %414 = vmatprep.subr.mxu0 0.0
      %415 = vmatpush1.msra.mxu0 0.0
      %416 = vmatprep.subr.mxu0 0.0
      %417 = vmatpush1.msra.mxu0 0.0
      %418 = vmatprep.subr.mxu0 0.0
      %419 = vmatpush1.msra.mxu0 0.0
      %420 = vmatprep.subr.mxu0 0.0
      %421 = vmatpush1.msra.mxu0 0.0
      %422 = vmatprep.subr.mxu0 0.0
      %423 = vmatpush1.msra.mxu0 0.0
      %424 = vmatprep.subr.mxu0 0.0
      %425 = vmatpush1.msra.mxu0 0.0
      %426 = vmatprep.subr.mxu0 0.0
      %427 = vmatpush1.msra.mxu0 0.0
      %428 = vmatprep.subr.mxu0 0.0
      %429 = vmatpush1.msra.mxu0 0.0
      %430 = vmatprep.subr.mxu0 0.0
      %431 = vmatpush1.msra.mxu0 0.0
      %432 = vmatprep.subr.mxu0 0.0
      %433 = vmatpush1.msra.mxu0 0.0
      %434 = vmatprep.subr.mxu0 0.0
      %435 = vmatpush1.msra.mxu0 0.0
      %436 = vmatprep.subr.mxu0 0.0
      %437 = vmatpush1.msra.mxu0 0.0
      %438 = vmatprep.subr.mxu0 0.0
      %439 = vmatpush1.msra.mxu0 0.0
      %440 = vmatprep.subr.mxu0 0.0
      %441 = vmatpush1.msra.mxu0 0.0
      %442 = vmatprep.subr.mxu0 0.0
      %443 = vmatpush1.msra.mxu0 0.0
      %444 = vmatprep.subr.mxu0 0.0
      %445 = vmatpush1.msra.mxu0 0.0
      %446 = vmatprep.mubr.f32.mxu0 0.0
      %v447 = vand.u32 %v144, 4294901760
      %v448 = vsub.f32 %v144, %v447
      %v449 = vand.u32 %v448, 4294901760
      %450 = vmatmul.mubr.f32.gmra.mrb[0].mxu0 %v449
      %v451 = vpop.f32.mrb[0].mxu0
      %v452 = vadd.f32 %v377, %v451
      %v453 = vpop.f32.mrb[0].mxu0
      %454 = vdwg.mxu0
      %455 = vmatprep.subr.mxu0 0.0
      %v456 = vand.u32 %v106, 4294901760
      %v457 = vsub.f32 %v106, %v456
      %v458 = vand.u32 %v457, 4294901760
      %459 = vmatpush1.msra.mxu0 %v458
      %460 = vmatprep.subr.mxu0 0.0
      %v461 = vand.u32 %v107, 4294901760
      %v462 = vsub.f32 %v107, %v461
      %v463 = vand.u32 %v462, 4294901760
      %464 = vmatpush1.msra.mxu0 %v463
      %465 = vmatprep.subr.mxu0 0.0
      %466 = vmatpush1.msra.mxu0 0.0
      %467 = vmatprep.subr.mxu0 0.0
      %468 = vmatpush1.msra.mxu0 0.0
      %469 = vmatprep.subr.mxu0 0.0
      %470 = vmatpush1.msra.mxu0 0.0
      %471 = vmatprep.subr.mxu0 0.0
      %472 = vmatpush1.msra.mxu0 0.0
      %473 = vmatprep.subr.mxu0 0.0
      %474 = vmatpush1.msra.mxu0 0.0
      %475 = vmatprep.subr.mxu0 0.0
      %476 = vmatpush1.msra.mxu0 0.0
      %477 = vmatprep.subr.mxu0 0.0
      %478 = vmatpush1.msra.mxu0 0.0
      %479 = vmatprep.subr.mxu0 0.0
      %480 = vmatpush1.msra.mxu0 0.0
      %481 = vmatprep.subr.mxu0 0.0
      %482 = vmatpush1.msra.mxu0 0.0
      %483 = vmatprep.subr.mxu0 0.0
      %484 = vmatpush1.msra.mxu0 0.0
      %485 = vmatprep.subr.mxu0 0.0
      %486 = vmatpush1.msra.mxu0 0.0
      %487 = vmatprep.subr.mxu0 0.0
      %488 = vmatpush1.msra.mxu0 0.0
      %489 = vmatprep.subr.mxu0 0.0
      %490 = vmatpush1.msra.mxu0 0.0
      %491 = vmatprep.subr.mxu0 0.0
      %492 = vmatpush1.msra.mxu0 0.0
      %493 = vmatprep.subr.mxu0 0.0
      %494 = vmatpush1.msra.mxu0 0.0
      %495 = vmatprep.subr.mxu0 0.0
      %496 = vmatpush1.msra.mxu0 0.0
      %497 = vmatprep.subr.mxu0 0.0
      %498 = vmatpush1.msra.mxu0 0.0
      %499 = vmatprep.subr.mxu0 0.0
      %500 = vmatpush1.msra.mxu0 0.0
      %501 = vmatprep.subr.mxu0 0.0
      %502 = vmatpush1.msra.mxu0 0.0
      %503 = vmatprep.subr.mxu0 0.0
      %504 = vmatpush1.msra.mxu0 0.0
      %505 = vmatprep.subr.mxu0 0.0
      %506 = vmatpush1.msra.mxu0 0.0
      %507 = vmatprep.subr.mxu0 0.0
      %508 = vmatpush1.msra.mxu0 0.0
      %509 = vmatprep.subr.mxu0 0.0
      %510 = vmatpush1.msra.mxu0 0.0
      %511 = vmatprep.subr.mxu0 0.0
      %512 = vmatpush1.msra.mxu0 0.0
      %513 = vmatprep.subr.mxu0 0.0
      %514 = vmatpush1.msra.mxu0 0.0
      %515 = vmatprep.subr.mxu0 0.0
      %516 = vmatpush1.msra.mxu0 0.0
      %517 = vmatprep.subr.mxu0 0.0
      %518 = vmatpush1.msra.mxu0 0.0
      %519 = vmatprep.subr.mxu0 0.0
      %520 = vmatpush1.msra.mxu0 0.0
      %521 = vmatprep.subr.mxu0 0.0
      %522 = vmatpush1.msra.mxu0 0.0
      %523 = vmatprep.subr.mxu0 0.0
      %524 = vmatpush1.msra.mxu0 0.0
      %525 = vmatprep.mubr.f32.mxu0 0.0
      %v526 = vand.u32 %v144, 4294901760
      %527 = vmatmul.mubr.f32.gmra.mrb[0].mxu0 %v526
      %v528 = vpop.f32.mrb[0].mxu0
      %v529 = vadd.f32 %v452, %v528
      %v530 = vpop.f32.mrb[0].mxu0
      %531 = vdwg.mxu0
      %532 = vmatprep.subr.mxu0 0.0
      %v533 = vand.u32 %v106, 4294901760
      %534 = vmatpush1.msra.mxu0 %v533
      %535 = vmatprep.subr.mxu0 0.0
      %v536 = vand.u32 %v107, 4294901760
      %537 = vmatpush1.msra.mxu0 %v536
      %538 = vmatprep.subr.mxu0 0.0
      %539 = vmatpush1.msra.mxu0 0.0
      %540 = vmatprep.subr.mxu0 0.0
      %541 = vmatpush1.msra.mxu0 0.0
      %542 = vmatprep.subr.mxu0 0.0
      %543 = vmatpush1.msra.mxu0 0.0
      %544 = vmatprep.subr.mxu0 0.0
      %545 = vmatpush1.msra.mxu0 0.0
      %546 = vmatprep.subr.mxu0 0.0
      %547 = vmatpush1.msra.mxu0 0.0
      %548 = vmatprep.subr.mxu0 0.0
      %549 = vmatpush1.msra.mxu0 0.0
      %550 = vmatprep.subr.mxu0 0.0
      %551 = vmatpush1.msra.mxu0 0.0
      %552 = vmatprep.subr.mxu0 0.0
      %553 = vmatpush1.msra.mxu0 0.0
      %554 = vmatprep.subr.mxu0 0.0
      %555 = vmatpush1.msra.mxu0 0.0
      %556 = vmatprep.subr.mxu0 0.0
      %557 = vmatpush1.msra.mxu0 0.0
      %558 = vmatprep.subr.mxu0 0.0
      %559 = vmatpush1.msra.mxu0 0.0
      %560 = vmatprep.subr.mxu0 0.0
      %561 = vmatpush1.msra.mxu0 0.0
      %562 = vmatprep.subr.mxu0 0.0
      %563 = vmatpush1.msra.mxu0 0.0
      %564 = vmatprep.subr.mxu0 0.0
      %565 = vmatpush1.msra.mxu0 0.0
      %566 = vmatprep.subr.mxu0 0.0
      %567 = vmatpush1.msra.mxu0 0.0
      %568 = vmatprep.subr.mxu0 0.0
      %569 = vmatpush1.msra.mxu0 0.0
      %570 = vmatprep.subr.mxu0 0.0
      %571 = vmatpush1.msra.mxu0 0.0
      %572 = vmatprep.subr.mxu0 0.0
      %573 = vmatpush1.msra.mxu0 0.0
      %574 = vmatprep.subr.mxu0 0.0
      %575 = vmatpush1.msra.mxu0 0.0
      %576 = vmatprep.subr.mxu0 0.0
      %577 = vmatpush1.msra.mxu0 0.0
      %578 = vmatprep.subr.mxu0 0.0
      %579 = vmatpush1.msra.mxu0 0.0
      %580 = vmatprep.subr.mxu0 0.0
      %581 = vmatpush1.msra.mxu0 0.0
      %582 = vmatprep.subr.mxu0 0.0
      %583 = vmatpush1.msra.mxu0 0.0
      %584 = vmatprep.subr.mxu0 0.0
      %585 = vmatpush1.msra.mxu0 0.0
      %586 = vmatprep.subr.mxu0 0.0
      %587 = vmatpush1.msra.mxu0 0.0
      %588 = vmatprep.subr.mxu0 0.0
      %589 = vmatpush1.msra.mxu0 0.0
      %590 = vmatprep.subr.mxu0 0.0
      %591 = vmatpush1.msra.mxu0 0.0
      %592 = vmatprep.subr.mxu0 0.0
      %593 = vmatpush1.msra.mxu0 0.0
      %594 = vmatprep.subr.mxu0 0.0
      %595 = vmatpush1.msra.mxu0 0.0
      %596 = vmatprep.subr.mxu0 0.0
      %597 = vmatpush1.msra.mxu0 0.0
      %598 = vmatprep.mubr.f32.mxu0 0.0
      %v599 = vand.u32 %v144, 4294901760
      %600 = vmatmul.mubr.f32.gmra.mrb[0].mxu0 %v599
      %v601 = vpop.f32.mrb[0].mxu0
      %v602 = vadd.f32 %v529, %v601
      %v603 = vpop.f32.mrb[0].mxu0
      %604 = vdwg.mxu0
      %vm605 = vcmask 25600
      %v606 = vsel %vm605, %v602, 0.0
      %607 = vadd.xlane.f32.xlu0 %v606
      %v608 = vpop.xlane.xlu0 %607
      %v609 = vrcp.pop 4.0
      %v610 = vmul.f32 %v608, %v609
      %v611 = vsub.f32 %v602, %v610
      %v612 = vmul.f32 %v611, %v611
      %v613 = vsel %vm605, %v612, 0.0
      %614 = vadd.xlane.f32.xlu0 %v613
      %v615 = vpop.xlane.xlu0 %614
      %v616 = vmul.f32 %v615, %v609
      %v617 = vld [vmem:[%s3] sm:$0x1]
      %v618 = vadd.f32 %v616, 1e-05
      %v619 = vrsqrt.pop %v618
      %v621 = vlaneseq
      %v622 = vshrl.u32 %v621, 7
      %v623 = vsub.s32 0, %v622
      %v624 = vrot.slane %v617, %v623
      %v626 = vmul.f32 %v624, %v619
      %v627 = vmul.f32 %v602, %v626
      %v628 = vld [vmem:[%s4] sm:$0x1]
      %v629 = vmul.f32 %v610, %v626
      %v631 = vlaneseq
      %v632 = vshrl.u32 %v631, 7
      %v633 = vsub.s32 0, %v632
      %v634 = vrot.slane %v628, %v633
      %v636 = vsub.f32 %v634, %v629
      %v637 = vadd.f32 %v627, %v636
      %v638 = vmax.f32 %v637, 0.0
      %v639 = vld [vmem:[%s5] sm:$0xf]
      %v640 = vld [vmem:[%s6] sm:$0x1]
      %v642 = vlaneseq
      %v643 = vshrl.u32 %v642, 7
      %v644 = vsub.s32 0, %v643
      %v645 = vrot.slane %v640, %v644
      %vm647 = vcmask 31744
      %v649 = vsel %vm647, %v638, 0
      %vm651 = vcmask 1043456
      %v653 = vsel %vm651, %v639, 0
      %655 = vmatprep.subr.mxu0 0.0
      %v656 = vand.u32 %v653, 4294901760
      %657 = vmatpush1.msra.mxu0 %v656
      %658 = vmatprep.subr.mxu0 0.0
      %659 = vmatpush1.msra.mxu0 0.0
      %660 = vmatprep.subr.mxu0 0.0
      %661 = vmatpush1.msra.mxu0 0.0
      %662 = vmatprep.subr.mxu0 0.0
      %663 = vmatpush1.msra.mxu0 0.0
      %664 = vmatprep.subr.mxu0 0.0
      %665 = vmatpush1.msra.mxu0 0.0
      %666 = vmatprep.subr.mxu0 0.0
      %667 = vmatpush1.msra.mxu0 0.0
      %668 = vmatprep.subr.mxu0 0.0
      %669 = vmatpush1.msra.mxu0 0.0
      %670 = vmatprep.subr.mxu0 0.0
      %671 = vmatpush1.msra.mxu0 0.0
      %672 = vmatprep.subr.mxu0 0.0
      %673 = vmatpush1.msra.mxu0 0.0
      %674 = vmatprep.subr.mxu0 0.0
      %675 = vmatpush1.msra.mxu0 0.0
      %676 = vmatprep.subr.mxu0 0.0
      %677 = vmatpush1.msra.mxu0 0.0
      %678 = vmatprep.subr.mxu0 0.0
      %679 = vmatpush1.msra.mxu0 0.0
      %680 = vmatprep.subr.mxu0 0.0
      %681 = vmatpush1.msra.mxu0 0.0
      %682 = vmatprep.subr.mxu0 0.0
      %683 = vmatpush1.msra.mxu0 0.0
      %684 = vmatprep.subr.mxu0 0.0
      %685 = vmatpush1.msra.mxu0 0.0
      %686 = vmatprep.subr.mxu0 0.0
      %687 = vmatpush1.msra.mxu0 0.0
      %688 = vmatprep.subr.mxu0 0.0
      %689 = vmatpush1.msra.mxu0 0.0
      %690 = vmatprep.subr.mxu0 0.0
      %691 = vmatpush1.msra.mxu0 0.0
      %692 = vmatprep.subr.mxu0 0.0
      %693 = vmatpush1.msra.mxu0 0.0
      %694 = vmatprep.subr.mxu0 0.0
      %695 = vmatpush1.msra.mxu0 0.0
      %696 = vmatprep.subr.mxu0 0.0
      %697 = vmatpush1.msra.mxu0 0.0
      %698 = vmatprep.subr.mxu0 0.0
      %699 = vmatpush1.msra.mxu0 0.0
      %700 = vmatprep.subr.mxu0 0.0
      %701 = vmatpush1.msra.mxu0 0.0
      %702 = vmatprep.subr.mxu0 0.0
      %703 = vmatpush1.msra.mxu0 0.0
      %704 = vmatprep.subr.mxu0 0.0
      %705 = vmatpush1.msra.mxu0 0.0
      %706 = vmatprep.subr.mxu0 0.0
      %707 = vmatpush1.msra.mxu0 0.0
      %708 = vmatprep.subr.mxu0 0.0
      %709 = vmatpush1.msra.mxu0 0.0
      %710 = vmatprep.subr.mxu0 0.0
      %711 = vmatpush1.msra.mxu0 0.0
      %712 = vmatprep.subr.mxu0 0.0
      %713 = vmatpush1.msra.mxu0 0.0
      %714 = vmatprep.subr.mxu0 0.0
      %715 = vmatpush1.msra.mxu0 0.0
      %716 = vmatprep.subr.mxu0 0.0
      %717 = vmatpush1.msra.mxu0 0.0
      %718 = vmatprep.subr.mxu0 0.0
      %719 = vmatpush1.msra.mxu0 0.0
      %720 = vmatprep.mubr.f32.mxu0 0.0
      %v721 = vand.u32 %v649, 4294901760
      %v722 = vsub.f32 %v649, %v721
      %v723 = vand.u32 %v722, 4294901760
      %v724 = vsub.f32 %v722, %v723
      %v725 = vand.u32 %v724, 4294901760
      %726 = vmatmul.mubr.f32.gmra.mrb[0].mxu0 %v725
      %v727 = vpop.f32.mrb[0].mxu0
      %v728 = vadd.f32 %v645, %v727
      %v729 = vpop.f32.mrb[0].mxu0
      %730 = vdwg.mxu0
      %731 = vmatprep.subr.mxu0 0.0
      %v732 = vand.u32 %v653, 4294901760
      %v733 = vsub.f32 %v653, %v732
      %v734 = vand.u32 %v733, 4294901760
      %v735 = vsub.f32 %v733, %v734
      %v736 = vand.u32 %v735, 4294901760
      %737 = vmatpush1.msra.mxu0 %v736
      %738 = vmatprep.subr.mxu0 0.0
      %739 = vmatpush1.msra.mxu0 0.0
      %740 = vmatprep.subr.mxu0 0.0
      %741 = vmatpush1.msra.mxu0 0.0
      %742 = vmatprep.subr.mxu0 0.0
      %743 = vmatpush1.msra.mxu0 0.0
      %744 = vmatprep.subr.mxu0 0.0
      %745 = vmatpush1.msra.mxu0 0.0
      %746 = vmatprep.subr.mxu0 0.0
      %747 = vmatpush1.msra.mxu0 0.0
      %748 = vmatprep.subr.mxu0 0.0
      %749 = vmatpush1.msra.mxu0 0.0
      %750 = vmatprep.subr.mxu0 0.0
      %751 = vmatpush1.msra.mxu0 0.0
      %752 = vmatprep.subr.mxu0 0.0
      %753 = vmatpush1.msra.mxu0 0.0
      %754 = vmatprep.subr.mxu0 0.0
      %755 = vmatpush1.msra.mxu0 0.0
      %756 = vmatprep.subr.mxu0 0.0
      %757 = vmatpush1.msra.mxu0 0.0
      %758 = vmatprep.subr.mxu0 0.0
      %759 = vmatpush1.msra.mxu0 0.0
      %760 = vmatprep.subr.mxu0 0.0
      %761 = vmatpush1.msra.mxu0 0.0
      %762 = vmatprep.subr.mxu0 0.0
      %763 = vmatpush1.msra.mxu0 0.0
      %764 = vmatprep.subr.mxu0 0.0
      %765 = vmatpush1.msra.mxu0 0.0
      %766 = vmatprep.subr.mxu0 0.0
      %767 = vmatpush1.msra.mxu0 0.0
      %768 = vmatprep.subr.mxu0 0.0
      %769 = vmatpush1.msra.mxu0 0.0
      %770 = vmatprep.subr.mxu0 0.0
      %771 = vmatpush1.msra.mxu0 0.0
      %772 = vmatprep.subr.mxu0 0.0
      %773 = vmatpush1.msra.mxu0 0.0
      %774 = vmatprep.subr.mxu0 0.0
      %775 = vmatpush1.msra.mxu0 0.0
      %776 = vmatprep.subr.mxu0 0.0
      %777 = vmatpush1.msra.mxu0 0.0
      %778 = vmatprep.subr.mxu0 0.0
      %779 = vmatpush1.msra.mxu0 0.0
      %780 = vmatprep.subr.mxu0 0.0
      %781 = vmatpush1.msra.mxu0 0.0
      %782 = vmatprep.subr.mxu0 0.0
      %783 = vmatpush1.msra.mxu0 0.0
      %784 = vmatprep.subr.mxu0 0.0
      %785 = vmatpush1.msra.mxu0 0.0
      %786 = vmatprep.subr.mxu0 0.0
      %787 = vmatpush1.msra.mxu0 0.0
      %788 = vmatprep.subr.mxu0 0.0
      %789 = vmatpush1.msra.mxu0 0.0
      %790 = vmatprep.subr.mxu0 0.0
      %791 = vmatpush1.msra.mxu0 0.0
      %792 = vmatprep.subr.mxu0 0.0
      %793 = vmatpush1.msra.mxu0 0.0
      %794 = vmatprep.subr.mxu0 0.0
      %795 = vmatpush1.msra.mxu0 0.0
      %796 = vmatprep.subr.mxu0 0.0
      %797 = vmatpush1.msra.mxu0 0.0
      %798 = vmatprep.subr.mxu0 0.0
      %799 = vmatpush1.msra.mxu0 0.0
      %800 = vmatprep.mubr.f32.mxu0 0.0
      %v801 = vand.u32 %v649, 4294901760
      %802 = vmatmul.mubr.f32.gmra.mrb[0].mxu0 %v801
      %v803 = vpop.f32.mrb[0].mxu0
      %v804 = vadd.f32 %v728, %v803
      %v805 = vpop.f32.mrb[0].mxu0
      %806 = vdwg.mxu0
      %807 = vmatprep.subr.mxu0 0.0
      %v808 = vand.u32 %v653, 4294901760
      %v809 = vsub.f32 %v653, %v808
      %810 = vmatpush1.msra.mxu0 %v809
      %811 = vmatprep.subr.mxu0 0.0
      %812 = vmatpush1.msra.mxu0 0.0
      %813 = vmatprep.subr.mxu0 0.0
      %814 = vmatpush1.msra.mxu0 0.0
      %815 = vmatprep.subr.mxu0 0.0
      %816 = vmatpush1.msra.mxu0 0.0
      %817 = vmatprep.subr.mxu0 0.0
      %818 = vmatpush1.msra.mxu0 0.0
      %819 = vmatprep.subr.mxu0 0.0
      %820 = vmatpush1.msra.mxu0 0.0
      %821 = vmatprep.subr.mxu0 0.0
      %822 = vmatpush1.msra.mxu0 0.0
      %823 = vmatprep.subr.mxu0 0.0
      %824 = vmatpush1.msra.mxu0 0.0
      %825 = vmatprep.subr.mxu0 0.0
      %826 = vmatpush1.msra.mxu0 0.0
      %827 = vmatprep.subr.mxu0 0.0
      %828 = vmatpush1.msra.mxu0 0.0
      %829 = vmatprep.subr.mxu0 0.0
      %830 = vmatpush1.msra.mxu0 0.0
      %831 = vmatprep.subr.mxu0 0.0
      %832 = vmatpush1.msra.mxu0 0.0
      %833 = vmatprep.subr.mxu0 0.0
      %834 = vmatpush1.msra.mxu0 0.0
      %835 = vmatprep.subr.mxu0 0.0
      %836 = vmatpush1.msra.mxu0 0.0
      %837 = vmatprep.subr.mxu0 0.0
      %838 = vmatpush1.msra.mxu0 0.0
      %839 = vmatprep.subr.mxu0 0.0
      %840 = vmatpush1.msra.mxu0 0.0
      %841 = vmatprep.subr.mxu0 0.0
      %842 = vmatpush1.msra.mxu0 0.0
      %843 = vmatprep.subr.mxu0 0.0
      %844 = vmatpush1.msra.mxu0 0.0
      %845 = vmatprep.subr.mxu0 0.0
      %846 = vmatpush1.msra.mxu0 0.0
      %847 = vmatprep.subr.mxu0 0.0
      %848 = vmatpush1.msra.mxu0 0.0
      %849 = vmatprep.subr.mxu0 0.0
      %850 = vmatpush1.msra.mxu0 0.0
      %851 = vmatprep.subr.mxu0 0.0
      %852 = vmatpush1.msra.mxu0 0.0
      %853 = vmatprep.subr.mxu0 0.0
      %854 = vmatpush1.msra.mxu0 0.0
      %855 = vmatprep.subr.mxu0 0.0
      %856 = vmatpush1.msra.mxu0 0.0
      %857 = vmatprep.subr.mxu0 0.0
      %858 = vmatpush1.msra.mxu0 0.0
      %859 = vmatprep.subr.mxu0 0.0
      %860 = vmatpush1.msra.mxu0 0.0
      %861 = vmatprep.subr.mxu0 0.0
      %862 = vmatpush1.msra.mxu0 0.0
      %863 = vmatprep.subr.mxu0 0.0
      %864 = vmatpush1.msra.mxu0 0.0
      %865 = vmatprep.subr.mxu0 0.0
      %866 = vmatpush1.msra.mxu0 0.0
      %867 = vmatprep.subr.mxu0 0.0
      %868 = vmatpush1.msra.mxu0 0.0
      %869 = vmatprep.subr.mxu0 0.0
      %870 = vmatpush1.msra.mxu0 0.0
      %871 = vmatprep.subr.mxu0 0.0
      %872 = vmatpush1.msra.mxu0 0.0
      %873 = vmatprep.mubr.f32.mxu0 0.0
      %v874 = vand.u32 %v649, 4294901760
      %v875 = vsub.f32 %v649, %v874
      %876 = vmatmul.mubr.f32.gmra.mrb[0].mxu0 %v875
      %v877 = vpop.f32.mrb[0].mxu0
      %v878 = vadd.f32 %v804, %v877
      %v879 = vpop.f32.mrb[0].mxu0
      %880 = vdwg.mxu0
      %881 = vmatprep.subr.mxu0 0.0
      %v882 = vand.u32 %v653, 4294901760
      %883 = vmatpush1.msra.mxu0 %v882
      %884 = vmatprep.subr.mxu0 0.0
      %885 = vmatpush1.msra.mxu0 0.0
      %886 = vmatprep.subr.mxu0 0.0
      %887 = vmatpush1.msra.mxu0 0.0
      %888 = vmatprep.subr.mxu0 0.0
      %889 = vmatpush1.msra.mxu0 0.0
      %890 = vmatprep.subr.mxu0 0.0
      %891 = vmatpush1.msra.mxu0 0.0
      %892 = vmatprep.subr.mxu0 0.0
      %893 = vmatpush1.msra.mxu0 0.0
      %894 = vmatprep.subr.mxu0 0.0
      %895 = vmatpush1.msra.mxu0 0.0
      %896 = vmatprep.subr.mxu0 0.0
      %897 = vmatpush1.msra.mxu0 0.0
      %898 = vmatprep.subr.mxu0 0.0
      %899 = vmatpush1.msra.mxu0 0.0
      %900 = vmatprep.subr.mxu0 0.0
      %901 = vmatpush1.msra.mxu0 0.0
      %902 = vmatprep.subr.mxu0 0.0
      %903 = vmatpush1.msra.mxu0 0.0
      %904 = vmatprep.subr.mxu0 0.0
      %905 = vmatpush1.msra.mxu0 0.0
      %906 = vmatprep.subr.mxu0 0.0
      %907 = vmatpush1.msra.mxu0 0.0
      %908 = vmatprep.subr.mxu0 0.0
      %909 = vmatpush1.msra.mxu0 0.0
      %910 = vmatprep.subr.mxu0 0.0
      %911 = vmatpush1.msra.mxu0 0.0
      %912 = vmatprep.subr.mxu0 0.0
      %913 = vmatpush1.msra.mxu0 0.0
      %914 = vmatprep.subr.mxu0 0.0
      %915 = vmatpush1.msra.mxu0 0.0
      %916 = vmatprep.subr.mxu0 0.0
      %917 = vmatpush1.msra.mxu0 0.0
      %918 = vmatprep.subr.mxu0 0.0
      %919 = vmatpush1.msra.mxu0 0.0
      %920 = vmatprep.subr.mxu0 0.0
      %921 = vmatpush1.msra.mxu0 0.0
      %922 = vmatprep.subr.mxu0 0.0
      %923 = vmatpush1.msra.mxu0 0.0
      %924 = vmatprep.subr.mxu0 0.0
      %925 = vmatpush1.msra.mxu0 0.0
      %926 = vmatprep.subr.mxu0 0.0
      %927 = vmatpush1.msra.mxu0 0.0
      %928 = vmatprep.subr.mxu0 0.0
      %929 = vmatpush1.msra.mxu0 0.0
      %930 = vmatprep.subr.mxu0 0.0
      %931 = vmatpush1.msra.mxu0 0.0
      %932 = vmatprep.subr.mxu0 0.0
      %933 = vmatpush1.msra.mxu0 0.0
      %934 = vmatprep.subr.mxu0 0.0
      %935 = vmatpush1.msra.mxu0 0.0
      %936 = vmatprep.subr.mxu0 0.0
      %937 = vmatpush1.msra.mxu0 0.0
      %938 = vmatprep.subr.mxu0 0.0
      %939 = vmatpush1.msra.mxu0 0.0
      %940 = vmatprep.subr.mxu0 0.0
      %941 = vmatpush1.msra.mxu0 0.0
      %942 = vmatprep.subr.mxu0 0.0
      %943 = vmatpush1.msra.mxu0 0.0
      %944 = vmatprep.subr.mxu0 0.0
      %945 = vmatpush1.msra.mxu0 0.0
      %946 = vmatprep.mubr.f32.mxu0 0.0
      %v947 = vand.u32 %v649, 4294901760
      %v948 = vsub.f32 %v649, %v947
      %v949 = vand.u32 %v948, 4294901760
      %950 = vmatmul.mubr.f32.gmra.mrb[0].mxu0 %v949
      %v951 = vpop.f32.mrb[0].mxu0
      %v952 = vadd.f32 %v878, %v951
      %v953 = vpop.f32.mrb[0].mxu0
      %954 = vdwg.mxu0
      %955 = vmatprep.subr.mxu0 0.0
      %v956 = vand.u32 %v653, 4294901760
      %v957 = vsub.f32 %v653, %v956
      %v958 = vand.u32 %v957, 4294901760
      %959 = vmatpush1.msra.mxu0 %v958
      %960 = vmatprep.subr.mxu0 0.0
      %961 = vmatpush1.msra.mxu0 0.0
      %962 = vmatprep.subr.mxu0 0.0
      %963 = vmatpush1.msra.mxu0 0.0
      %964 = vmatprep.subr.mxu0 0.0
      %965 = vmatpush1.msra.mxu0 0.0
      %966 = vmatprep.subr.mxu0 0.0
      %967 = vmatpush1.msra.mxu0 0.0
      %968 = vmatprep.subr.mxu0 0.0
      %969 = vmatpush1.msra.mxu0 0.0
      %970 = vmatprep.subr.mxu0 0.0
      %971 = vmatpush1.msra.mxu0 0.0
      %972 = vmatprep.subr.mxu0 0.0
      %973 = vmatpush1.msra.mxu0 0.0
      %974 = vmatprep.subr.mxu0 0.0
      %975 = vmatpush1.msra.mxu0 0.0
      %976 = vmatprep.subr.mxu0 0.0
      %977 = vmatpush1.msra.mxu0 0.0
      %978 = vmatprep.subr.mxu0 0.0
      %979 = vmatpush1.msra.mxu0 0.0
      %980 = vmatprep.subr.mxu0 0.0
      %981 = vmatpush1.msra.mxu0 0.0
      %982 = vmatprep.subr.mxu0 0.0
      %983 = vmatpush1.msra.mxu0 0.0
      %984 = vmatprep.subr.mxu0 0.0
      %985 = vmatpush1.msra.mxu0 0.0
      %986 = vmatprep.subr.mxu0 0.0
      %987 = vmatpush1.msra.mxu0 0.0
      %988 = vmatprep.subr.mxu0 0.0
      %989 = vmatpush1.msra.mxu0 0.0
      %990 = vmatprep.subr.mxu0 0.0
      %991 = vmatpush1.msra.mxu0 0.0
      %992 = vmatprep.subr.mxu0 0.0
      %993 = vmatpush1.msra.mxu0 0.0
      %994 = vmatprep.subr.mxu0 0.0
      %995 = vmatpush1.msra.mxu0 0.0
      %996 = vmatprep.subr.mxu0 0.0
      %997 = vmatpush1.msra.mxu0 0.0
      %998 = vmatprep.subr.mxu0 0.0
      %999 = vmatpush1.msra.mxu0 0.0
      %1000 = vmatprep.subr.mxu0 0.0
      %1001 = vmatpush1.msra.mxu0 0.0
      %1002 = vmatprep.subr.mxu0 0.0
      %1003 = vmatpush1.msra.mxu0 0.0
      %1004 = vmatprep.subr.mxu0 0.0
      %1005 = vmatpush1.msra.mxu0 0.0
      %1006 = vmatprep.subr.mxu0 0.0
      %1007 = vmatpush1.msra.mxu0 0.0
      %1008 = vmatprep.subr.mxu0 0.0
      %1009 = vmatpush1.msra.mxu0 0.0
      %1010 = vmatprep.subr.mxu0 0.0
      %1011 = vmatpush1.msra.mxu0 0.0
      %1012 = vmatprep.subr.mxu0 0.0
      %1013 = vmatpush1.msra.mxu0 0.0
      %1014 = vmatprep.subr.mxu0 0.0
      %1015 = vmatpush1.msra.mxu0 0.0
      %1016 = vmatprep.subr.mxu0 0.0
      %1017 = vmatpush1.msra.mxu0 0.0
      %1018 = vmatprep.subr.mxu0 0.0
      %1019 = vmatpush1.msra.mxu0 0.0
      %1020 = vmatprep.subr.mxu0 0.0
      %1021 = vmatpush1.msra.mxu0 0.0
      %1022 = vmatprep.mubr.f32.mxu0 0.0
      %v1023 = vand.u32 %v649, 4294901760
      %1024 = vmatmul.mubr.f32.gmra.mrb[0].mxu0 %v1023
      %v1025 = vpop.f32.mrb[0].mxu0
      %v1026 = vadd.f32 %v952, %v1025
      %v1027 = vpop.f32.mrb[0].mxu0
      %1028 = vdwg.mxu0
      %1029 = vmatprep.subr.mxu0 0.0
      %v1030 = vand.u32 %v653, 4294901760
      %1031 = vmatpush1.msra.mxu0 %v1030
      %1032 = vmatprep.subr.mxu0 0.0
      %1033 = vmatpush1.msra.mxu0 0.0
      %1034 = vmatprep.subr.mxu0 0.0
      %1035 = vmatpush1.msra.mxu0 0.0
      %1036 = vmatprep.subr.mxu0 0.0
      %1037 = vmatpush1.msra.mxu0 0.0
      %1038 = vmatprep.subr.mxu0 0.0
      %1039 = vmatpush1.msra.mxu0 0.0
      %1040 = vmatprep.subr.mxu0 0.0
      %1041 = vmatpush1.msra.mxu0 0.0
      %1042 = vmatprep.subr.mxu0 0.0
      %1043 = vmatpush1.msra.mxu0 0.0
      %1044 = vmatprep.subr.mxu0 0.0
      %1045 = vmatpush1.msra.mxu0 0.0
      %1046 = vmatprep.subr.mxu0 0.0
      %1047 = vmatpush1.msra.mxu0 0.0
      %1048 = vmatprep.subr.mxu0 0.0
      %1049 = vmatpush1.msra.mxu0 0.0
      %1050 = vmatprep.subr.mxu0 0.0
      %1051 = vmatpush1.msra.mxu0 0.0
      %1052 = vmatprep.subr.mxu0 0.0
      %1053 = vmatpush1.msra.mxu0 0.0
      %1054 = vmatprep.subr.mxu0 0.0
      %1055 = vmatpush1.msra.mxu0 0.0
      %1056 = vmatprep.subr.mxu0 0.0
      %1057 = vmatpush1.msra.mxu0 0.0
      %1058 = vmatprep.subr.mxu0 0.0
      %1059 = vmatpush1.msra.mxu0 0.0
      %1060 = vmatprep.subr.mxu0 0.0
      %1061 = vmatpush1.msra.mxu0 0.0
      %1062 = vmatprep.subr.mxu0 0.0
      %1063 = vmatpush1.msra.mxu0 0.0
      %1064 = vmatprep.subr.mxu0 0.0
      %1065 = vmatpush1.msra.mxu0 0.0
      %1066 = vmatprep.subr.mxu0 0.0
      %1067 = vmatpush1.msra.mxu0 0.0
      %1068 = vmatprep.subr.mxu0 0.0
      %1069 = vmatpush1.msra.mxu0 0.0
      %1070 = vmatprep.subr.mxu0 0.0
      %1071 = vmatpush1.msra.mxu0 0.0
      %1072 = vmatprep.subr.mxu0 0.0
      %1073 = vmatpush1.msra.mxu0 0.0
      %1074 = vmatprep.subr.mxu0 0.0
      %1075 = vmatpush1.msra.mxu0 0.0
      %1076 = vmatprep.subr.mxu0 0.0
      %1077 = vmatpush1.msra.mxu0 0.0
      %1078 = vmatprep.subr.mxu0 0.0
      %1079 = vmatpush1.msra.mxu0 0.0
      %1080 = vmatprep.subr.mxu0 0.0
      %1081 = vmatpush1.msra.mxu0 0.0
      %1082 = vmatprep.subr.mxu0 0.0
      %1083 = vmatpush1.msra.mxu0 0.0
      %1084 = vmatprep.subr.mxu0 0.0
      %1085 = vmatpush1.msra.mxu0 0.0
      %1086 = vmatprep.subr.mxu0 0.0
      %1087 = vmatpush1.msra.mxu0 0.0
      %1088 = vmatprep.subr.mxu0 0.0
      %1089 = vmatpush1.msra.mxu0 0.0
      %1090 = vmatprep.subr.mxu0 0.0
      %1091 = vmatpush1.msra.mxu0 0.0
      %1092 = vmatprep.subr.mxu0 0.0
      %1093 = vmatpush1.msra.mxu0 0.0
      %1094 = vmatprep.mubr.f32.mxu0 0.0
      %v1095 = vand.u32 %v649, 4294901760
      %1096 = vmatmul.mubr.f32.gmra.mrb[0].mxu0 %v1095
      %v1097 = vpop.f32.mrb[0].mxu0
      %v1098 = vadd.f32 %v1026, %v1097
      %v1099 = vpop.f32.mrb[0].mxu0
      %1100 = vdwg.mxu0
      %vm1101 = vcmask 58368
      %v1102 = vsel %vm1101, %v1098, 0.0
      %1103 = vadd.xlane.f32.xlu0 %v1102
      %v1104 = vpop.xlane.xlu0 %1103
      %v1105 = vrcp.pop 8.0
      %v1106 = vmul.f32 %v1104, %v1105
      %v1107 = vsub.f32 %v1098, %v1106
      %v1108 = vmul.f32 %v1107, %v1107
      %v1109 = vsel %vm1101, %v1108, 0.0
      %1110 = vadd.xlane.f32.xlu0 %v1109
      %v1111 = vpop.xlane.xlu0 %1110
      %v1112 = vmul.f32 %v1111, %v1105
      %v1113 = vld [vmem:[%s7] sm:$0x1]
      %v1114 = vadd.f32 %v1112, 1e-05
      %v1115 = vrsqrt.pop %v1114
      %v1117 = vlaneseq
      %v1118 = vshrl.u32 %v1117, 7
      %v1119 = vsub.s32 0, %v1118
      %v1120 = vrot.slane %v1113, %v1119
      %v1122 = vmul.f32 %v1120, %v1115
      %v1123 = vmul.f32 %v1098, %v1122
      %v1124 = vld [vmem:[%s8] sm:$0x1]
      %v1125 = vmul.f32 %v1106, %v1122
      %v1127 = vlaneseq
      %v1128 = vshrl.u32 %v1127, 7
      %v1129 = vsub.s32 0, %v1128
      %v1130 = vrot.slane %v1124, %v1129
      %v1132 = vsub.f32 %v1130, %v1125
      %v1133 = vadd.f32 %v1123, %v1132
      %v1134 = vxor.u32 %v1133, 2147483648
      %v1135 = vmul.f32 %v1134, 1.442695
      %v1136 = vpow.pop %v1135
      %v1137 = vadd.f32 %v1136, 1.0
      %v1138 = vrcp.pop %v1137
      %v1139 = vmul.f32 1.0, %v1138
      %v1142 = vunpack.c.l.s4 1966171168
      %v1143 = vunpack.c.0.s8 %v1142
      %v1144 = vlaneseq
      %v1145 = vshrl.u32 %v1144, 7
      %v1146 = vsub.s32 %v1143, %v1145
      %v1147 = vrot.slane %v1139, %v1146
      %v1148 = vcombine.high %v1147, %v1147
      %v1150 = vunpack.c.l.s4 1966171168
      %v1151 = vunpack.c.0.s8 %v1150
      %v1152 = vlaneseq
      %v1153 = vshrl.u32 %v1152, 7
      %v1154 = vsub.s32 %v1151, %v1153
      %v1155 = vrot.slane %v1147, %v1154
      %v1157 = vunpack.c.l.s4 1966171168
      %v1158 = vunpack.c.0.s8 %v1157
      %v1159 = vlaneseq
      %v1160 = vshrl.u32 %v1159, 7
      %v1161 = vsub.s32 %v1158, %v1160
      %v1162 = vrot.slane %v1148, %v1161
      %vm1165 = vcmask 57344
      %1166 = vst.msk [vmem:[#allocation6] sm:$0x1] %vm1165, %v1155
      %1167 = vst.msk [vmem:[#allocation6 + $0x1] sm:$0x1] %vm1165, %v1162
    $region49: #{tpu_custom_call.1} parent=1 // pred_fallthru
      _
    // Predicated region
    $region50: #{tpu_custom_call.1} parent=1 // pred_check
      _
    $region51: #{tpu_custom_call.1} parent=1 // pred_check_branch
      %1169 = sbr.rel (0) target = $region53
    $region52: #{tpu_custom_call.1} parent=1 // pred_region
      %s1171 = ssub.s32 32, 32
      %1172 = vsyncadd [#allocation5], %s1171
      %s1173 = sshll.u32 [#allocation6], 4
      %s1174 = int_to_ptr.vmem [resolvable:$true] %s1173
      %1179 = dma.vmem_to_hbm [thread:$0]  %s1174, 32, %s9, [#allocation5], 16, 16, 1
    $region53: #{tpu_custom_call.1} parent=1 // pred_fallthru
      _
    // Predicated region
    $region54: #{tpu_custom_call.1} parent=1 // pred_check
      _
    $region55: #{tpu_custom_call.1} parent=1 // pred_check_branch
      %1181 = sbr.rel (0) target = $region57
    $region56: #{tpu_custom_call.1} parent=1 // pred_region
      %1182 = dma.done [#allocation5], 32
    $region57: #{tpu_custom_call.1} parent=1 // pred_fallthru
      _
    %1183 = vsyncpa [#allocation4], 1
    %1184 = vsyncpa [#allocation5], 1

</llo_original>
